<compile_context>
chip_gen: v7x
topology: tpu7x:2x2x1
jax: 0.10.0
libtpu: 0.0.40
codegen_flags: <defaults>
</compile_context>

<pallas_src>
import functools
import math

import jax
import jax.numpy as jnp
from jax import lax
from jax.experimental import pallas as pl
from jax.experimental.pallas import tpu as pltpu


# ----------------------------------------------------------------------------
# helpers
# ----------------------------------------------------------------------------

def _row_tile(m):
    """Largest row tile (multiple of 8, <=512) that divides m; else full m."""
    for t in (512, 256, 128, 64, 32, 16, 8):
        if m % t == 0:
            return t
    return m


_BF16 = jnp.bfloat16


# ----------------------------------------------------------------------------
# Pallas kernels
# ----------------------------------------------------------------------------

def _linear_kernel(x_ref, w_ref, b_ref, o_ref, *, activation):
    # x: [tm, K]  w: [K, Np]  b: [1, Np]   (bf16 operands, f32 accumulate)
    y = jnp.dot(x_ref[...].astype(_BF16), w_ref[...].astype(_BF16),
                preferred_element_type=jnp.float32) + b_ref[...]
    if activation == "relu":
        y = jnp.maximum(y, 0.0)
    elif activation == "tanh":
        y = jnp.tanh(y)
    o_ref[...] = y.astype(o_ref.dtype)


def pallas_linear(x2d, w, b, activation=None, pad_lanes=True):
    """y = act(x @ w + b); output N zero-padded to a multiple of 128 for
    lane-dense stores, sliced back before returning."""
    M, K = x2d.shape
    N = w.shape[1]
    Np = N
    if pad_lanes and N % 128 != 0:
        Np = pl.cdiv(N, 128) * 128
        w = jnp.pad(w, ((0, 0), (0, Np - N)))
        b = jnp.pad(b, ((0, Np - N),))
    tm = _row_tile(M)
    kern = functools.partial(_linear_kernel, activation=activation)
    out = pl.pallas_call(
        kern,
        out_shape=jax.ShapeDtypeStruct((M, Np), jnp.float32),
        grid=(M // tm,),
        in_specs=[
            pl.BlockSpec((tm, K), lambda i: (i, 0)),
            pl.BlockSpec((K, Np), lambda i: (0, 0)),
            pl.BlockSpec((1, Np), lambda i: (0, 0)),
        ],
        out_specs=pl.BlockSpec((tm, Np), lambda i: (i, 0)),
        compiler_params=pltpu.CompilerParams(dimension_semantics=("parallel",)),
    )(x2d, w, b.reshape(1, Np))
    return out[:, :N] if Np != N else out


def _logits_kernel(x_ref, e_ref, o_ref):
    # logits = x @ emb.T  (contract dim 1 with dim 1; no transposed copy of emb)
    y = lax.dot_general(x_ref[...].astype(_BF16), e_ref[...].astype(_BF16),
                        dimension_numbers=(((1,), (1,)), ((), ())),
                        preferred_element_type=jnp.float32)
    o_ref[...] = y.astype(o_ref.dtype)


def pallas_tied_logits(x2d, emb_table):
    M, D = x2d.shape
    V = emb_table.shape[0]
    Vp = pl.cdiv(V, 128) * 128
    embp = jnp.pad(emb_table, ((0, Vp - V), (0, 0))) if Vp != V else emb_table
    tm = _row_tile(M)
    out = pl.pallas_call(
        _logits_kernel,
        out_shape=jax.ShapeDtypeStruct((M, Vp), jnp.float32),
        grid=(M // tm,),
        in_specs=[
            pl.BlockSpec((tm, D), lambda i: (i, 0)),
            pl.BlockSpec((Vp, D), lambda i: (0, 0)),
        ],
        out_specs=pl.BlockSpec((tm, Vp), lambda i: (i, 0)),
        compiler_params=pltpu.CompilerParams(dimension_semantics=("parallel",)),
    )(x2d, embp)
    return out[:, :V] if Vp != V else out


def _ffn_ln_kernel(x_ref, w1_ref, b1_ref, w2_ref, b2_ref, g_ref, be_ref, o_ref,
                   *, eps):
    # LayerNorm(x + FFN(x)) fused; FFN matmuls bf16/f32-acc, LN in f32
    x = x_ref[...]
    h = jnp.dot(x.astype(_BF16), w1_ref[...].astype(_BF16),
                preferred_element_type=jnp.float32) + b1_ref[...]
    h = jnp.maximum(h, 0.0)
    y = jnp.dot(h.astype(_BF16), w2_ref[...].astype(_BF16),
                preferred_element_type=jnp.float32) + b2_ref[...]
    y = y + x
    mu = jnp.mean(y, axis=-1, keepdims=True)
    var = jnp.mean((y - mu) * (y - mu), axis=-1, keepdims=True)
    o_ref[...] = ((y - mu) * lax.rsqrt(var + eps) * g_ref[...] + be_ref[...]).astype(
        o_ref.dtype)


def pallas_ffn_ln(x3d, w1, b1, w2, b2, gamma, beta, eps=1e-5):
    B, S, D = x3d.shape
    F = w1.shape[1]
    M = B * S
    tm = _row_tile(M)
    kern = functools.partial(_ffn_ln_kernel, eps=eps)
    out = pl.pallas_call(
        kern,
        out_shape=jax.ShapeDtypeStruct((M, D), jnp.float32),
        grid=(M // tm,),
        in_specs=[
            pl.BlockSpec((tm, D), lambda i: (i, 0)),
            pl.BlockSpec((D, F), lambda i: (0, 0)),
            pl.BlockSpec((1, F), lambda i: (0, 0)),
            pl.BlockSpec((F, D), lambda i: (0, 0)),
            pl.BlockSpec((1, D), lambda i: (0, 0)),
            pl.BlockSpec((1, D), lambda i: (0, 0)),
            pl.BlockSpec((1, D), lambda i: (0, 0)),
        ],
        out_specs=pl.BlockSpec((tm, D), lambda i: (i, 0)),
        compiler_params=pltpu.CompilerParams(dimension_semantics=("parallel",)),
    )(x3d.reshape(M, D), w1, b1.reshape(1, F), w2, b2.reshape(1, D),
      gamma.reshape(1, D), beta.reshape(1, D))
    return out.reshape(B, S, D)


def _attn_block_kernel(xq_ref, xkv_ref, bias_ref, wq_ref, bq_ref, wkv_ref,
                       bkv_ref, wo_ref, bo_ref, g_ref, be_ref, o_ref,
                       *, heads, inv_scale, eps):
    # Per batch element:  LN( xq + (softmax((Q K^T)/scale + bias) V) Wo + bo )
    xq = xq_ref[0]       # [Lq, D]
    xkv = xkv_ref[0]     # [Lk, D]
    bias = bias_ref[0]   # [Lq, Lk] additive mask bias (0 keep / -1e10 masked)
    D = xq.shape[-1]
    Dh = D // heads

    q = jnp.dot(xq.astype(_BF16), wq_ref[...].astype(_BF16),
                preferred_element_type=jnp.float32) + bq_ref[...]
    kv = jnp.dot(xkv.astype(_BF16), wkv_ref[...].astype(_BF16),
                 preferred_element_type=jnp.float32) + bkv_ref[...]
    k = kv[:, :D]
    v = kv[:, D:]

    ctx_parts = []
    for h in range(heads):                       # static unroll over heads
        lo, hi = h * Dh, (h + 1) * Dh
        e = lax.dot_general(q[:, lo:hi], k[:, lo:hi],
                            dimension_numbers=(((1,), (1,)), ((), ())),
                            preferred_element_type=jnp.float32)
        e = e * inv_scale + bias
        e = e - jnp.max(e, axis=-1, keepdims=True)
        p = jnp.exp(e)
        p = p * pl.reciprocal(jnp.sum(p, axis=-1, keepdims=True), approx=True)
        ctx_parts.append(jnp.dot(p, v[:, lo:hi],
                                 preferred_element_type=jnp.float32))
    ctx = jnp.concatenate(ctx_parts, axis=-1)    # [Lq, D]

    o = jnp.dot(ctx.astype(_BF16), wo_ref[...].astype(_BF16),
                preferred_element_type=jnp.float32) + bo_ref[...]
    y = xq + o
    mu = jnp.mean(y, axis=-1, keepdims=True)
    var = jnp.mean((y - mu) * (y - mu), axis=-1, keepdims=True)
    o_ref[0] = ((y - mu) * lax.rsqrt(var + eps) * g_ref[...] + be_ref[...]).astype(
        o_ref.dtype)


def pallas_attn_block(xq, xkv, bias, p, gamma, beta, heads, eps=1e-5):
    """Fused multi-head attention block + residual + LayerNorm (residual = xq)."""
    B, Lq, D = xq.shape
    Lk = xkv.shape[1]
    Dh = D // heads
    kern = functools.partial(_attn_block_kernel, heads=heads,
                             inv_scale=1.0 / math.sqrt(Dh), eps=eps)
    return pl.pallas_call(
        kern,
        out_shape=jax.ShapeDtypeStruct((B, Lq, D), jnp.float32),
        grid=(B,),
        in_specs=[
            pl.BlockSpec((1, Lq, D), lambda b: (b, 0, 0)),      # xq (also residual)
            pl.BlockSpec((1, Lk, D), lambda b: (b, 0, 0)),      # xkv
            pl.BlockSpec((1, Lq, Lk), lambda b: (b, 0, 0)),     # additive mask bias
            pl.BlockSpec((D, D), lambda b: (0, 0)),             # wq
            pl.BlockSpec((1, D), lambda b: (0, 0)),             # bq
            pl.BlockSpec((D, 2 * D), lambda b: (0, 0)),         # wkv (fused)
            pl.BlockSpec((1, 2 * D), lambda b: (0, 0)),         # bkv (fused)
            pl.BlockSpec((D, D), lambda b: (0, 0)),             # wo
            pl.BlockSpec((1, D), lambda b: (0, 0)),             # bo
            pl.BlockSpec((1, D), lambda b: (0, 0)),             # gamma
            pl.BlockSpec((1, D), lambda b: (0, 0)),             # beta
        ],
        out_specs=pl.BlockSpec((1, Lq, D), lambda b: (b, 0, 0)),
        compiler_params=pltpu.CompilerParams(dimension_semantics=("parallel",)),
    )(xq, xkv, bias,
      p["wq"], p["bq"].reshape(1, D),
      p["wkv"], p["bkv"].reshape(1, 2 * D),
      p["wo"], p["bo"].reshape(1, D),
      gamma.reshape(1, D), beta.reshape(1, D))


def _syn_head_kernel(trg_ref, oe_ref, pe_ref, wao_ref, vao_ref, wap_ref,
                     vap_ref, fh_ref, o_ref, *, hid_dim):
    # score[t,w] = sum_d V * tanh(W * concat(trg[t], emb[w]))  (elementwise ->
    # factors exactly into the two halves); softmax over w; c = a @ emb.
    # Then out_dec = tanh(concat(trg, c_o, c_p) @ f_h)  (all fused).
    t = trg_ref[0]       # [T, D]
    oe = oe_ref[0]       # [W, D]
    pe = pe_ref[0]       # [W, D]

    def syn_ctx(emb, w_vec, v_vec):
        w_h, w_e = w_vec[:, :hid_dim], w_vec[:, hid_dim:]
        v_h, v_e = v_vec[:, :hid_dim], v_vec[:, hid_dim:]
        s_h = jnp.sum(v_h * jnp.tanh(w_h * t), axis=-1, keepdims=True)    # [T,1]
        s_e = jnp.sum(v_e * jnp.tanh(w_e * emb), axis=-1, keepdims=True)  # [W,1]
        score = s_h + s_e.T                                               # [T,W]
        score = score - jnp.max(score, axis=-1, keepdims=True)
        a = jnp.exp(score)
        a = a * pl.reciprocal(jnp.sum(a, axis=-1, keepdims=True), approx=True)
        return jnp.dot(a, emb, preferred_element_type=jnp.float32)        # [T,D]

    c_o = syn_ctx(oe, wao_ref[...], vao_ref[...])
    c_p = syn_ctx(pe, wap_ref[...], vap_ref[...])
    cat = jnp.concatenate([t, c_o, c_p], axis=-1)                         # [T,3D]
    out = jnp.tanh(jnp.dot(cat.astype(_BF16), fh_ref[...].astype(_BF16),
                           preferred_element_type=jnp.float32))
    o_ref[0] = out.astype(o_ref.dtype)


def pallas_synonym_head(trg, o_emb, p_emb, w_a_o, v_a_o, w_a_p, v_a_p, f_h,
                        hid_dim):
    B, T, D = trg.shape
    W = o_emb.shape[1]
    kern = functools.partial(_syn_head_kernel, hid_dim=hid_dim)
    return pl.pallas_call(
        kern,
        out_shape=jax.ShapeDtypeStruct((B, T, D), jnp.float32),
        grid=(B,),
        in_specs=[
            pl.BlockSpec((1, T, D), lambda b: (b, 0, 0)),
            pl.BlockSpec((1, W, D), lambda b: (b, 0, 0)),
            pl.BlockSpec((1, W, D), lambda b: (b, 0, 0)),
            pl.BlockSpec((1, 2 * D), lambda b: (0, 0)),
            pl.BlockSpec((1, 2 * D), lambda b: (0, 0)),
            pl.BlockSpec((1, 2 * D), lambda b: (0, 0)),
            pl.BlockSpec((1, 2 * D), lambda b: (0, 0)),
            pl.BlockSpec((3 * D, D), lambda b: (0, 0)),
        ],
        out_specs=pl.BlockSpec((1, T, D), lambda b: (b, 0, 0)),
        compiler_params=pltpu.CompilerParams(dimension_semantics=("parallel",)),
    )(trg, o_emb, p_emb,
      w_a_o.reshape(1, 2 * D), v_a_o.reshape(1, 2 * D),
      w_a_p.reshape(1, 2 * D), v_a_p.reshape(1, 2 * D), f_h)


# ----------------------------------------------------------------------------
# Model glue (plain JAX around the kernels)
# ----------------------------------------------------------------------------

def make_position_encoding(max_len, d):
    pos = jnp.arange(max_len, dtype=jnp.float32)[:, None]
    div = jnp.exp(jnp.arange(0, d, 2, dtype=jnp.float32) * (-math.log(10000.0) / d))
    pe = jnp.zeros((max_len, d), jnp.float32)
    pe = pe.at[:, 0::2].set(jnp.sin(pos * div))
    pe = pe.at[:, 1::2].set(jnp.cos(pos * div))
    return pe


def encoder_layer(src, src_bias, p, heads):
    src = pallas_attn_block(src, src, src_bias, p["attn"], p["ln1_g"], p["ln1_b"],
                            heads)
    src = pallas_ffn_ln(src, p["ff_w1"], p["ff_b1"], p["ff_w2"], p["ff_b2"],
                        p["ln2_g"], p["ln2_b"])
    return src


def decoder_layer(trg, enc_src, trg_bias, cross_bias, p, heads):
    trg = pallas_attn_block(trg, trg, trg_bias, p["self_attn"],
                            p["ln1_g"], p["ln1_b"], heads)
    trg = pallas_attn_block(trg, enc_src, cross_bias, p["enc_attn"],
                            p["ln2_g"], p["ln2_b"], heads)
    trg = pallas_ffn_ln(trg, p["ff_w1"], p["ff_b1"], p["ff_w2"], p["ff_b2"],
                        p["ln3_g"], p["ln3_b"])
    return trg


def transformer_forward(params, encode_input, decode_input, synonym_dict,
                        *, heads, hid_dim, padding_idx):
    emb_table = params["tok_embedding"]            # [vocab, D]
    pe = params["pe"]                              # [max_len, D]
    scale = math.sqrt(float(hid_dim))

    B, S = encode_input.shape
    T = decode_input.shape[1]
    W = synonym_dict.shape[1]

    # additive mask biases (0.0 keep / -1e10 masked), precomputed in wrapper
    src_keep = (encode_input != padding_idx).astype(jnp.float32)       # [B, S]
    src_bias_row = (src_keep - 1.0) * 1e10                              # [B, S]
    enc_self_bias = jnp.broadcast_to(src_bias_row[:, None, :], (B, S, S))
    cross_bias = jnp.broadcast_to(src_bias_row[:, None, :], (B, T, S))
    trg_keep = (decode_input != padding_idx).astype(jnp.float32)        # [B, T]
    tril = jnp.tril(jnp.ones((T, T), jnp.float32))
    dec_self_bias = (trg_keep[:, None, :] * tril[None, :, :] - 1.0) * 1e10

    # ---- encoder ----
    src = jnp.take(emb_table, encode_input, axis=0) * scale + pe[:S][None, :, :]
    for lp in params["enc_layers"]:
        src = encoder_layer(src, enc_self_bias, lp, heads)
    encode_output = src

    # ---- synonym labeling head (no bias; tanh) ----
    syn_logits = pallas_linear(
        encode_output.reshape(B * S, hid_dim), params["w_syn"],
        jnp.zeros((2,), jnp.float32), activation="tanh").reshape(B, S, 2)
    synonym_hat = jnp.argmax(syn_logits, axis=-1)

    # ---- decoder ----
    trg = jnp.take(emb_table, decode_input, axis=0) * scale + pe[:T][None, :, :]

    sent_synonym_o = synonym_dict[:, :, 0]
    o_embedding = jnp.take(emb_table, sent_synonym_o, axis=0)           # [B, W, D]
    p_embedding = jnp.broadcast_to(params["pe_syn"][:W][None, :, :],
                                   (B, W, hid_dim))                     # [B, W, D]

    for lp in params["dec_layers"]:
        trg = decoder_layer(trg, encode_output, dec_self_bias, cross_bias, lp,
                            heads)

    # ---- synonym attentions + f_h projection (fused) ----
    out_dec = pallas_synonym_head(trg, o_embedding, p_embedding,
                                  params["W_a_o"], params["V_a_o"],
                                  params["W_a_p"], params["V_a_p"],
                                  params["f_h"], hid_dim)               # [B, T, D]

    # ---- tied-embedding logits (lane-dense, no emb.T materialization) ----
    vocab = emb_table.shape[0]
    logits = pallas_tied_logits(out_dec.reshape(B * T, hid_dim),
                                emb_table).reshape(B, T, vocab)
    y_hat = jnp.argmax(logits, axis=-1)

    return logits, y_hat, syn_logits, synonym_hat


# ----------------------------------------------------------------------------
# Deterministic parameter initialization
# ----------------------------------------------------------------------------

def _init_attn(key, D):
    kq, kk, kv, ko = jax.random.split(key, 4)
    wq = jax.random.normal(kq, (D, D), jnp.float32) * 0.02
    wk = jax.random.normal(kk, (D, D), jnp.float32) * 0.02
    wv = jax.random.normal(kv, (D, D), jnp.float32) * 0.02
    wo = jax.random.normal(ko, (D, D), jnp.float32) * 0.02
    return {
        "wq": wq, "bq": jnp.zeros((D,), jnp.float32),
        "wkv": jnp.concatenate([wk, wv], axis=1),       # fused K|V weight [D, 2D]
        "bkv": jnp.zeros((2 * D,), jnp.float32),
        "wo": wo, "bo": jnp.zeros((D,), jnp.float32),
    }


def _init_ff(key, D, F):
    k1, k2 = jax.random.split(key)
    return {
        "ff_w1": jax.random.normal(k1, (D, F), jnp.float32) * 0.02,
        "ff_b1": jnp.zeros((F,), jnp.float32),
        "ff_w2": jax.random.normal(k2, (F, D), jnp.float32) * 0.02,
        "ff_b2": jnp.zeros((D,), jnp.float32),
    }


def init_params(key, vocab, D, heads, F, n_layers, max_len, padding_idx):
    keys = jax.random.split(key, 16)
    emb = jax.random.normal(keys[0], (vocab, D), jnp.float32) * 0.02
    emb = emb.at[padding_idx].set(0.0)   # nn.Embedding padding_idx row is zero

    enc_layers = []
    for i in range(n_layers):
        k = jax.random.fold_in(keys[1], i)
        ka, kf = jax.random.split(k)
        lp = {"attn": _init_attn(ka, D),
              "ln1_g": jnp.ones((D,), jnp.float32), "ln1_b": jnp.zeros((D,), jnp.float32),
              "ln2_g": jnp.ones((D,), jnp.float32), "ln2_b": jnp.zeros((D,), jnp.float32)}
        lp.update(_init_ff(kf, D, F))
        enc_layers.append(lp)

    dec_layers = []
    for i in range(n_layers):
        k = jax.random.fold_in(keys[2], i)
        ka, kb, kf = jax.random.split(k, 3)
        lp = {"self_attn": _init_attn(ka, D),
              "enc_attn": _init_attn(kb, D),
              "ln1_g": jnp.ones((D,), jnp.float32), "ln1_b": jnp.zeros((D,), jnp.float32),
              "ln2_g": jnp.ones((D,), jnp.float32), "ln2_b": jnp.zeros((D,), jnp.float32),
              "ln3_g": jnp.ones((D,), jnp.float32), "ln3_b": jnp.zeros((D,), jnp.float32)}
        lp.update(_init_ff(kf, D, F))
        dec_layers.append(lp)

    params = {
        "tok_embedding": emb,
        "pe": make_position_encoding(max_len, D),
        "pe_syn": make_position_encoding(max_len, D),
        "enc_layers": enc_layers,
        "dec_layers": dec_layers,
        "W_a_o": jax.random.normal(keys[3], (2 * D,), jnp.float32) * 0.01,
        "V_a_o": jax.random.normal(keys[4], (2 * D,), jnp.float32) * 0.01,
        "W_a_p": jax.random.normal(keys[5], (2 * D,), jnp.float32) * 0.01,
        "V_a_p": jax.random.normal(keys[6], (2 * D,), jnp.float32) * 0.01,
        "f_h": jax.random.normal(keys[7], (3 * D, D), jnp.float32) * 0.01,
        "w_syn": jax.random.normal(keys[8], (D, 2), jnp.float32) * 0.02,
    }
    return params


# ----------------------------------------------------------------------------
# Main
# ----------------------------------------------------------------------------

if __name__ == "__main__":
    VOCAB = 50
    D_MODEL = 32
    HEADS = 4
    D_FF = 64
    N_LAYERS = 2
    MAX_LEN = 100
    PAD = 0

    B, SRC_LEN, TRG_LEN, SYN_LEN = 2, 8, 8, 4

    key = jax.random.PRNGKey(0)
    k_par, k_e, k_d, k_s = jax.random.split(key, 4)

    params = init_params(k_par, VOCAB, D_MODEL, HEADS, D_FF, N_LAYERS, MAX_LEN, PAD)

    encode_input = jax.random.randint(k_e, (B, SRC_LEN), 1, VOCAB, dtype=jnp.int32)
    decode_input = jax.random.randint(k_d, (B, TRG_LEN), 1, VOCAB, dtype=jnp.int32)
    synonym_dict = jax.random.randint(k_s, (B, SYN_LEN, 2), 1, VOCAB, dtype=jnp.int32)

    fwd = functools.partial(transformer_forward, heads=HEADS,
                            hid_dim=D_MODEL, padding_idx=PAD)

    logits, y_hat, syn_logits, syn_hat = fwd(params, encode_input, decode_input,
                                             synonym_dict)
    jax.block_until_ready((logits, y_hat, syn_logits, syn_hat))

    assert logits.shape == (B, TRG_LEN, VOCAB)
    assert y_hat.shape == (B, TRG_LEN)
    assert syn_logits.shape == (B, SRC_LEN, 2)
    assert syn_hat.shape == (B, SRC_LEN)
    # TODO(synk): dropout layers are treated as identity (inference semantics).
    print("KERNEL_OK")
</pallas_src>

<mosaic_0001>
module attributes {stable_mosaic.version = 11 : i64} {
  func.func @_attn_block_kernel(%arg0: i32, %arg1: memref<1x8x32xf32, #tpu.memory_space<vmem>>, %arg2: memref<1x8x32xf32, #tpu.memory_space<vmem>>, %arg3: memref<1x8x8xf32, #tpu.memory_space<vmem>>, %arg4: memref<32x32xf32, #tpu.memory_space<vmem>>, %arg5: memref<1x32xf32, #tpu.memory_space<vmem>>, %arg6: memref<32x64xf32, #tpu.memory_space<vmem>>, %arg7: memref<1x64xf32, #tpu.memory_space<vmem>>, %arg8: memref<32x32xf32, #tpu.memory_space<vmem>>, %arg9: memref<1x32xf32, #tpu.memory_space<vmem>>, %arg10: memref<1x32xf32, #tpu.memory_space<vmem>>, %arg11: memref<1x32xf32, #tpu.memory_space<vmem>>, %arg12: memref<1x8x32xf32, #tpu.memory_space<vmem>>) attributes {dimension_semantics = [#tpu.dimension_semantics<parallel>], iteration_bounds = array<i64: 2>, scalar_prefetch = 0 : i64, scratch_operands = 0 : i64, tpu.core_type = #tpu.core_type<tc>, window_params = [{transform_indices = @transform_0, window_bounds = array<i64: 1, 8, 32>}, {transform_indices = @transform_1, window_bounds = array<i64: 1, 8, 32>}, {transform_indices = @transform_2, window_bounds = array<i64: 1, 8, 8>}, {pipeline_mode = #tpu.pipeline_mode<synchronous>, transform_indices = @transform_3, window_bounds = array<i64: 32, 32>}, {pipeline_mode = #tpu.pipeline_mode<synchronous>, transform_indices = @transform_4, window_bounds = array<i64: 1, 32>}, {pipeline_mode = #tpu.pipeline_mode<synchronous>, transform_indices = @transform_5, window_bounds = array<i64: 32, 64>}, {pipeline_mode = #tpu.pipeline_mode<synchronous>, transform_indices = @transform_6, window_bounds = array<i64: 1, 64>}, {pipeline_mode = #tpu.pipeline_mode<synchronous>, transform_indices = @transform_7, window_bounds = array<i64: 32, 32>}, {pipeline_mode = #tpu.pipeline_mode<synchronous>, transform_indices = @transform_8, window_bounds = array<i64: 1, 32>}, {pipeline_mode = #tpu.pipeline_mode<synchronous>, transform_indices = @transform_9, window_bounds = array<i64: 1, 32>}, {pipeline_mode = #tpu.pipeline_mode<synchronous>, transform_indices = @transform_10, window_bounds = array<i64: 1, 32>}, {transform_indices = @transform_11, window_bounds = array<i64: 1, 8, 32>}]} {
    %c0 = arith.constant 0 : index
    %c0_0 = arith.constant 0 : index
    %c0_1 = arith.constant 0 : index
    %0 = vector.load %arg1[%c0, %c0_0, %c0_1] : memref<1x8x32xf32, #tpu.memory_space<vmem>>, vector<1x8x32xf32>
    %1 = vector.shape_cast %0 : vector<1x8x32xf32> to vector<8x32xf32>
    %c0_2 = arith.constant 0 : index
    %c0_3 = arith.constant 0 : index
    %c0_4 = arith.constant 0 : index
    %2 = vector.load %arg2[%c0_2, %c0_3, %c0_4] : memref<1x8x32xf32, #tpu.memory_space<vmem>>, vector<1x8x32xf32>
    %3 = vector.shape_cast %2 : vector<1x8x32xf32> to vector<8x32xf32>
    %c0_5 = arith.constant 0 : index
    %c0_6 = arith.constant 0 : index
    %c0_7 = arith.constant 0 : index
    %4 = vector.load %arg3[%c0_5, %c0_6, %c0_7] : memref<1x8x8xf32, #tpu.memory_space<vmem>>, vector<1x8x8xf32>
    %5 = vector.shape_cast %4 : vector<1x8x8xf32> to vector<8x8xf32>
    %6 = arith.truncf %1 : vector<8x32xf32> to vector<8x32xbf16>
    %c0_8 = arith.constant 0 : index
    %c0_9 = arith.constant 0 : index
    %7 = vector.load %arg4[%c0_8, %c0_9] : memref<32x32xf32, #tpu.memory_space<vmem>>, vector<32x32xf32>
    %8 = arith.truncf %7 : vector<32x32xf32> to vector<32x32xbf16>
    %cst = arith.constant dense<0.000000e+00> : vector<8x32xf32>
    %9 = tpu.matmul %6, %8, %cst {dimension_numbers = #tpu.dot_dimension_numbers<[1], [0], [0], [1], [0, 0, 1, 1], [], []>} : vector<8x32xbf16>, vector<32x32xbf16>, vector<8x32xf32> -> vector<8x32xf32>
    %c0_10 = arith.constant 0 : index
    %c0_11 = arith.constant 0 : index
    %10 = vector.load %arg5[%c0_10, %c0_11] : memref<1x32xf32, #tpu.memory_space<vmem>>, vector<1x32xf32>
    %11 = vector.broadcast %10 : vector<1x32xf32> to vector<8x32xf32>
    %12 = arith.addf %9, %11 : vector<8x32xf32>
    %13 = arith.truncf %3 : vector<8x32xf32> to vector<8x32xbf16>
    %c0_12 = arith.constant 0 : index
    %c0_13 = arith.constant 0 : index
    %14 = vector.load %arg6[%c0_12, %c0_13] : memref<32x64xf32, #tpu.memory_space<vmem>>, vector<32x64xf32>
    %15 = arith.truncf %14 : vector<32x64xf32> to vector<32x64xbf16>
    %cst_14 = arith.constant dense<0.000000e+00> : vector<8x64xf32>
    %16 = tpu.matmul %13, %15, %cst_14 {dimension_numbers = #tpu.dot_dimension_numbers<[1], [0], [0], [1], [0, 0, 1, 1], [], []>} : vector<8x32xbf16>, vector<32x64xbf16>, vector<8x64xf32> -> vector<8x64xf32>
    %c0_15 = arith.constant 0 : index
    %c0_16 = arith.constant 0 : index
    %17 = vector.load %arg7[%c0_15, %c0_16] : memref<1x64xf32, #tpu.memory_space<vmem>>, vector<1x64xf32>
    %18 = vector.broadcast %17 : vector<1x64xf32> to vector<8x64xf32>
    %19 = arith.addf %16, %18 : vector<8x64xf32>
    %20 = vector.extract_strided_slice %19 {offsets = [0, 0], sizes = [8, 32], strides = [1, 1]} : vector<8x64xf32> to vector<8x32xf32>
    %21 = vector.extract_strided_slice %19 {offsets = [0, 32], sizes = [8, 32], strides = [1, 1]} : vector<8x64xf32> to vector<8x32xf32>
    %22 = vector.extract_strided_slice %12 {offsets = [0, 0], sizes = [8, 8], strides = [1, 1]} : vector<8x32xf32> to vector<8x8xf32>
    %23 = vector.extract_strided_slice %20 {offsets = [0, 0], sizes = [8, 8], strides = [1, 1]} : vector<8x32xf32> to vector<8x8xf32>
    %cst_17 = arith.constant dense<0.000000e+00> : vector<8x8xf32>
    %24 = tpu.matmul %22, %23, %cst_17 {dimension_numbers = #tpu.dot_dimension_numbers<[1], [1], [0], [0], [0, 0, 1, 0], [], []>} : vector<8x8xf32>, vector<8x8xf32>, vector<8x8xf32> -> vector<8x8xf32>
    %cst_18 = arith.constant 0.353553385 : f32
    %25 = vector.broadcast %cst_18 : f32 to vector<8x8xf32>
    %26 = arith.mulf %24, %25 : vector<8x8xf32>
    %27 = arith.addf %26, %5 : vector<8x8xf32>
    %cst_19 = arith.constant dense<0xFF800000> : vector<8xf32>
    %28 = vector.multi_reduction <maximumf>, %27, %cst_19 [1] : vector<8x8xf32> to vector<8xf32>
    %29 = vector.shape_cast %28 : vector<8xf32> to vector<8x1xf32>
    %30 = vector.broadcast %29 : vector<8x1xf32> to vector<8x8xf32>
    %31 = arith.subf %27, %30 : vector<8x8xf32>
    %32 = math.exp %31 : vector<8x8xf32>
    %cst_20 = arith.constant dense<0.000000e+00> : vector<8xf32>
    %33 = vector.multi_reduction <add>, %32, %cst_20 [1] : vector<8x8xf32> to vector<8xf32>
    %34 = vector.shape_cast %33 : vector<8xf32> to vector<8x1xf32>
    %35 = tpu.reciprocal %34 {approx = true} : vector<8x1xf32> -> vector<8x1xf32>
    %36 = vector.broadcast %35 : vector<8x1xf32> to vector<8x8xf32>
    %37 = arith.mulf %32, %36 : vector<8x8xf32>
    %38 = vector.extract_strided_slice %21 {offsets = [0, 0], sizes = [8, 8], strides = [1, 1]} : vector<8x32xf32> to vector<8x8xf32>
    %cst_21 = arith.constant dense<0.000000e+00> : vector<8x8xf32>
    %39 = tpu.matmul %37, %38, %cst_21 {dimension_numbers = #tpu.dot_dimension_numbers<[1], [0], [0], [1], [0, 0, 1, 1], [], []>} : vector<8x8xf32>, vector<8x8xf32>, vector<8x8xf32> -> vector<8x8xf32>
    %40 = vector.extract_strided_slice %12 {offsets = [0, 8], sizes = [8, 8], strides = [1, 1]} : vector<8x32xf32> to vector<8x8xf32>
    %41 = vector.extract_strided_slice %20 {offsets = [0, 8], sizes = [8, 8], strides = [1, 1]} : vector<8x32xf32> to vector<8x8xf32>
    %cst_22 = arith.constant dense<0.000000e+00> : vector<8x8xf32>
    %42 = tpu.matmul %40, %41, %cst_22 {dimension_numbers = #tpu.dot_dimension_numbers<[1], [1], [0], [0], [0, 0, 1, 0], [], []>} : vector<8x8xf32>, vector<8x8xf32>, vector<8x8xf32> -> vector<8x8xf32>
    %cst_23 = arith.constant 0.353553385 : f32
    %43 = vector.broadcast %cst_23 : f32 to vector<8x8xf32>
    %44 = arith.mulf %42, %43 : vector<8x8xf32>
    %45 = arith.addf %44, %5 : vector<8x8xf32>
    %cst_24 = arith.constant dense<0xFF800000> : vector<8xf32>
    %46 = vector.multi_reduction <maximumf>, %45, %cst_24 [1] : vector<8x8xf32> to vector<8xf32>
    %47 = vector.shape_cast %46 : vector<8xf32> to vector<8x1xf32>
    %48 = vector.broadcast %47 : vector<8x1xf32> to vector<8x8xf32>
    %49 = arith.subf %45, %48 : vector<8x8xf32>
    %50 = math.exp %49 : vector<8x8xf32>
    %cst_25 = arith.constant dense<0.000000e+00> : vector<8xf32>
    %51 = vector.multi_reduction <add>, %50, %cst_25 [1] : vector<8x8xf32> to vector<8xf32>
    %52 = vector.shape_cast %51 : vector<8xf32> to vector<8x1xf32>
    %53 = tpu.reciprocal %52 {approx = true} : vector<8x1xf32> -> vector<8x1xf32>
    %54 = vector.broadcast %53 : vector<8x1xf32> to vector<8x8xf32>
    %55 = arith.mulf %50, %54 : vector<8x8xf32>
    %56 = vector.extract_strided_slice %21 {offsets = [0, 8], sizes = [8, 8], strides = [1, 1]} : vector<8x32xf32> to vector<8x8xf32>
    %cst_26 = arith.constant dense<0.000000e+00> : vector<8x8xf32>
    %57 = tpu.matmul %55, %56, %cst_26 {dimension_numbers = #tpu.dot_dimension_numbers<[1], [0], [0], [1], [0, 0, 1, 1], [], []>} : vector<8x8xf32>, vector<8x8xf32>, vector<8x8xf32> -> vector<8x8xf32>
    %58 = vector.extract_strided_slice %12 {offsets = [0, 16], sizes = [8, 8], strides = [1, 1]} : vector<8x32xf32> to vector<8x8xf32>
    %59 = vector.extract_strided_slice %20 {offsets = [0, 16], sizes = [8, 8], strides = [1, 1]} : vector<8x32xf32> to vector<8x8xf32>
    %cst_27 = arith.constant dense<0.000000e+00> : vector<8x8xf32>
    %60 = tpu.matmul %58, %59, %cst_27 {dimension_numbers = #tpu.dot_dimension_numbers<[1], [1], [0], [0], [0, 0, 1, 0], [], []>} : vector<8x8xf32>, vector<8x8xf32>, vector<8x8xf32> -> vector<8x8xf32>
    %cst_28 = arith.constant 0.353553385 : f32
    %61 = vector.broadcast %cst_28 : f32 to vector<8x8xf32>
    %62 = arith.mulf %60, %61 : vector<8x8xf32>
    %63 = arith.addf %62, %5 : vector<8x8xf32>
    %cst_29 = arith.constant dense<0xFF800000> : vector<8xf32>
    %64 = vector.multi_reduction <maximumf>, %63, %cst_29 [1] : vector<8x8xf32> to vector<8xf32>
    %65 = vector.shape_cast %64 : vector<8xf32> to vector<8x1xf32>
    %66 = vector.broadcast %65 : vector<8x1xf32> to vector<8x8xf32>
    %67 = arith.subf %63, %66 : vector<8x8xf32>
    %68 = math.exp %67 : vector<8x8xf32>
    %cst_30 = arith.constant dense<0.000000e+00> : vector<8xf32>
    %69 = vector.multi_reduction <add>, %68, %cst_30 [1] : vector<8x8xf32> to vector<8xf32>
    %70 = vector.shape_cast %69 : vector<8xf32> to vector<8x1xf32>
    %71 = tpu.reciprocal %70 {approx = true} : vector<8x1xf32> -> vector<8x1xf32>
    %72 = vector.broadcast %71 : vector<8x1xf32> to vector<8x8xf32>
    %73 = arith.mulf %68, %72 : vector<8x8xf32>
    %74 = vector.extract_strided_slice %21 {offsets = [0, 16], sizes = [8, 8], strides = [1, 1]} : vector<8x32xf32> to vector<8x8xf32>
    %cst_31 = arith.constant dense<0.000000e+00> : vector<8x8xf32>
    %75 = tpu.matmul %73, %74, %cst_31 {dimension_numbers = #tpu.dot_dimension_numbers<[1], [0], [0], [1], [0, 0, 1, 1], [], []>} : vector<8x8xf32>, vector<8x8xf32>, vector<8x8xf32> -> vector<8x8xf32>
    %76 = vector.extract_strided_slice %12 {offsets = [0, 24], sizes = [8, 8], strides = [1, 1]} : vector<8x32xf32> to vector<8x8xf32>
    %77 = vector.extract_strided_slice %20 {offsets = [0, 24], sizes = [8, 8], strides = [1, 1]} : vector<8x32xf32> to vector<8x8xf32>
    %cst_32 = arith.constant dense<0.000000e+00> : vector<8x8xf32>
    %78 = tpu.matmul %76, %77, %cst_32 {dimension_numbers = #tpu.dot_dimension_numbers<[1], [1], [0], [0], [0, 0, 1, 0], [], []>} : vector<8x8xf32>, vector<8x8xf32>, vector<8x8xf32> -> vector<8x8xf32>
    %cst_33 = arith.constant 0.353553385 : f32
    %79 = vector.broadcast %cst_33 : f32 to vector<8x8xf32>
    %80 = arith.mulf %78, %79 : vector<8x8xf32>
    %81 = arith.addf %80, %5 : vector<8x8xf32>
    %cst_34 = arith.constant dense<0xFF800000> : vector<8xf32>
    %82 = vector.multi_reduction <maximumf>, %81, %cst_34 [1] : vector<8x8xf32> to vector<8xf32>
    %83 = vector.shape_cast %82 : vector<8xf32> to vector<8x1xf32>
    %84 = vector.broadcast %83 : vector<8x1xf32> to vector<8x8xf32>
    %85 = arith.subf %81, %84 : vector<8x8xf32>
    %86 = math.exp %85 : vector<8x8xf32>
    %cst_35 = arith.constant dense<0.000000e+00> : vector<8xf32>
    %87 = vector.multi_reduction <add>, %86, %cst_35 [1] : vector<8x8xf32> to vector<8xf32>
    %88 = vector.shape_cast %87 : vector<8xf32> to vector<8x1xf32>
    %89 = tpu.reciprocal %88 {approx = true} : vector<8x1xf32> -> vector<8x1xf32>
    %90 = vector.broadcast %89 : vector<8x1xf32> to vector<8x8xf32>
    %91 = arith.mulf %86, %90 : vector<8x8xf32>
    %92 = vector.extract_strided_slice %21 {offsets = [0, 24], sizes = [8, 8], strides = [1, 1]} : vector<8x32xf32> to vector<8x8xf32>
    %cst_36 = arith.constant dense<0.000000e+00> : vector<8x8xf32>
    %93 = tpu.matmul %91, %92, %cst_36 {dimension_numbers = #tpu.dot_dimension_numbers<[1], [0], [0], [1], [0, 0, 1, 1], [], []>} : vector<8x8xf32>, vector<8x8xf32>, vector<8x8xf32> -> vector<8x8xf32>
    %94 = tpu.concatenate %39, %57, %75, %93 in 1 : vector<8x8xf32>, vector<8x8xf32>, vector<8x8xf32>, vector<8x8xf32> -> vector<8x32xf32>
    %95 = arith.truncf %94 : vector<8x32xf32> to vector<8x32xbf16>
    %c0_37 = arith.constant 0 : index
    %c0_38 = arith.constant 0 : index
    %96 = vector.load %arg8[%c0_37, %c0_38] : memref<32x32xf32, #tpu.memory_space<vmem>>, vector<32x32xf32>
    %97 = arith.truncf %96 : vector<32x32xf32> to vector<32x32xbf16>
    %cst_39 = arith.constant dense<0.000000e+00> : vector<8x32xf32>
    %98 = tpu.matmul %95, %97, %cst_39 {dimension_numbers = #tpu.dot_dimension_numbers<[1], [0], [0], [1], [0, 0, 1, 1], [], []>} : vector<8x32xbf16>, vector<32x32xbf16>, vector<8x32xf32> -> vector<8x32xf32>
    %c0_40 = arith.constant 0 : index
    %c0_41 = arith.constant 0 : index
    %99 = vector.load %arg9[%c0_40, %c0_41] : memref<1x32xf32, #tpu.memory_space<vmem>>, vector<1x32xf32>
    %100 = vector.broadcast %99 : vector<1x32xf32> to vector<8x32xf32>
    %101 = arith.addf %98, %100 : vector<8x32xf32>
    %102 = arith.addf %1, %101 : vector<8x32xf32>
    %cst_42 = arith.constant dense<0.000000e+00> : vector<8xf32>
    %103 = vector.multi_reduction <add>, %102, %cst_42 [1] : vector<8x32xf32> to vector<8xf32>
    %104 = vector.shape_cast %103 : vector<8xf32> to vector<8x1xf32>
    %cst_43 = arith.constant 3.200000e+01 : f32
    %105 = vector.broadcast %cst_43 : f32 to vector<8x1xf32>
    %106 = arith.divf %104, %105 : vector<8x1xf32>
    %107 = vector.broadcast %106 : vector<8x1xf32> to vector<8x32xf32>
    %108 = arith.subf %102, %107 : vector<8x32xf32>
    %109 = vector.broadcast %106 : vector<8x1xf32> to vector<8x32xf32>
    %110 = arith.subf %102, %109 : vector<8x32xf32>
    %111 = arith.mulf %108, %110 : vector<8x32xf32>
    %cst_44 = arith.constant dense<0.000000e+00> : vector<8xf32>
    %112 = vector.multi_reduction <add>, %111, %cst_44 [1] : vector<8x32xf32> to vector<8xf32>
    %113 = vector.shape_cast %112 : vector<8xf32> to vector<8x1xf32>
    %cst_45 = arith.constant 3.200000e+01 : f32
    %114 = vector.broadcast %cst_45 : f32 to vector<8x1xf32>
    %115 = arith.divf %113, %114 : vector<8x1xf32>
    %116 = vector.broadcast %106 : vector<8x1xf32> to vector<8x32xf32>
    %117 = arith.subf %102, %116 : vector<8x32xf32>
    %cst_46 = arith.constant 9.99999974E-6 : f32
    %118 = vector.broadcast %cst_46 : f32 to vector<8x1xf32>
    %119 = arith.addf %115, %118 : vector<8x1xf32>
    %120 = math.rsqrt %119 : vector<8x1xf32>
    %121 = vector.broadcast %120 : vector<8x1xf32> to vector<8x32xf32>
    %122 = arith.mulf %117, %121 : vector<8x32xf32>
    %c0_47 = arith.constant 0 : index
    %c0_48 = arith.constant 0 : index
    %123 = vector.load %arg10[%c0_47, %c0_48] : memref<1x32xf32, #tpu.memory_space<vmem>>, vector<1x32xf32>
    %124 = vector.broadcast %123 : vector<1x32xf32> to vector<8x32xf32>
    %125 = arith.mulf %122, %124 : vector<8x32xf32>
    %c0_49 = arith.constant 0 : index
    %c0_50 = arith.constant 0 : index
    %126 = vector.load %arg11[%c0_49, %c0_50] : memref<1x32xf32, #tpu.memory_space<vmem>>, vector<1x32xf32>
    %127 = vector.broadcast %126 : vector<1x32xf32> to vector<8x32xf32>
    %128 = arith.addf %125, %127 : vector<8x32xf32>
    %c0_51 = arith.constant 0 : index
    %c0_52 = arith.constant 0 : index
    %c0_53 = arith.constant 0 : index
    %129 = vector.load %arg12[%c0_51, %c0_52, %c0_53] : memref<1x8x32xf32, #tpu.memory_space<vmem>>, vector<1x8x32xf32>
    %130 = vector.shape_cast %129 : vector<1x8x32xf32> to vector<8x32xf32>
    %131 = vector.shape_cast %128 : vector<8x32xf32> to vector<1x8x32xf32>
    tpu.vector_store %arg12[%c0_51, %c0_52, %c0_53], %131 {strides = array<i32>} : memref<1x8x32xf32, #tpu.memory_space<vmem>>, vector<1x8x32xf32>,
    return
  }
  func.func @transform_0(%arg0: i32) -> (i32, i32, i32) {
    %c0_i32 = arith.constant 0 : i32
    %c0_i32_0 = arith.constant 0 : i32
    %c0_i32_1 = arith.constant 0 : i32
    return %arg0, %c0_i32, %c0_i32_0 : i32, i32, i32
  }
  func.func @transform_1(%arg0: i32) -> (i32, i32, i32) {
    %c0_i32 = arith.constant 0 : i32
    %c0_i32_0 = arith.constant 0 : i32
    %c0_i32_1 = arith.constant 0 : i32
    return %arg0, %c0_i32, %c0_i32_0 : i32, i32, i32
  }
  func.func @transform_2(%arg0: i32) -> (i32, i32, i32) {
    %c0_i32 = arith.constant 0 : i32
    %c0_i32_0 = arith.constant 0 : i32
    %c0_i32_1 = arith.constant 0 : i32
    return %arg0, %c0_i32, %c0_i32_0 : i32, i32, i32
  }
  func.func @transform_3(%arg0: i32) -> (i32, i32) {
    %c0_i32 = arith.constant 0 : i32
    %c0_i32_0 = arith.constant 0 : i32
    %c0_i32_1 = arith.constant 0 : i32
    return %c0_i32, %c0_i32_0 : i32, i32
  }
  func.func @transform_4(%arg0: i32) -> (i32, i32) {
    %c0_i32 = arith.constant 0 : i32
    %c0_i32_0 = arith.constant 0 : i32
    %c0_i32_1 = arith.constant 0 : i32
    return %c0_i32, %c0_i32_0 : i32, i32
  }
  func.func @transform_5(%arg0: i32) -> (i32, i32) {
    %c0_i32 = arith.constant 0 : i32
    %c0_i32_0 = arith.constant 0 : i32
    %c0_i32_1 = arith.constant 0 : i32
    return %c0_i32, %c0_i32_0 : i32, i32
  }
  func.func @transform_6(%arg0: i32) -> (i32, i32) {
    %c0_i32 = arith.constant 0 : i32
    %c0_i32_0 = arith.constant 0 : i32
    %c0_i32_1 = arith.constant 0 : i32
    return %c0_i32, %c0_i32_0 : i32, i32
  }
  func.func @transform_7(%arg0: i32) -> (i32, i32) {
    %c0_i32 = arith.constant 0 : i32
    %c0_i32_0 = arith.constant 0 : i32
    %c0_i32_1 = arith.constant 0 : i32
    return %c0_i32, %c0_i32_0 : i32, i32
  }
  func.func @transform_8(%arg0: i32) -> (i32, i32) {
    %c0_i32 = arith.constant 0 : i32
    %c0_i32_0 = arith.constant 0 : i32
    %c0_i32_1 = arith.constant 0 : i32
    return %c0_i32, %c0_i32_0 : i32, i32
  }
  func.func @transform_9(%arg0: i32) -> (i32, i32) {
    %c0_i32 = arith.constant 0 : i32
    %c0_i32_0 = arith.constant 0 : i32
    %c0_i32_1 = arith.constant 0 : i32
    return %c0_i32, %c0_i32_0 : i32, i32
  }
  func.func @transform_10(%arg0: i32) -> (i32, i32) {
    %c0_i32 = arith.constant 0 : i32
    %c0_i32_0 = arith.constant 0 : i32
    %c0_i32_1 = arith.constant 0 : i32
    return %c0_i32, %c0_i32_0 : i32, i32
  }
  func.func @transform_11(%arg0: i32) -> (i32, i32, i32) {
    %c0_i32 = arith.constant 0 : i32
    %c0_i32_0 = arith.constant 0 : i32
    %c0_i32_1 = arith.constant 0 : i32
    return %arg0, %c0_i32, %c0_i32_0 : i32, i32, i32
  }
}

</mosaic_0001>

<llo_original>
// kernel: tpu_custom_call.1
$region0: #{tpu_custom_call.1}
  #allocation0 [shape = 'u32[]', space=smem, size = 0x4, offset = 0x4, fixed_abs, tag = 'smem constant byte address 0x4 - core index']
  #allocation1 [shape = 'u32[144,128]{1,0:T(1,128)}', space=vmem, size = 0x12000, scoped, tag = 'internal scratch']
  %s0 = inlined_call_operand.hbm [shape: f32[2,8,32], index: 0, kind: input, shape index: {}]
  %s1 = inlined_call_operand.hbm [shape: f32[2,8,32], index: 1, kind: input, shape index: {}]
  %s2 = inlined_call_operand.hbm [shape: f32[2,8,8], index: 2, kind: input, shape index: {}]
  %s3 = inlined_call_operand.hbm [shape: f32[32,32], index: 3, kind: input, shape index: {}]
  %s4 = inlined_call_operand.vmem [shape: f32[1,32], index: 4, kind: input, shape index: {}]
  %s5 = inlined_call_operand.hbm [shape: f32[32,64], index: 5, kind: input, shape index: {}]
  %s6 = inlined_call_operand.vmem [shape: f32[1,64], index: 6, kind: input, shape index: {}]
  %s7 = inlined_call_operand.hbm [shape: f32[32,32], index: 7, kind: input, shape index: {}]
  %s8 = inlined_call_operand.vmem [shape: f32[1,32], index: 8, kind: input, shape index: {}]
  %s9 = inlined_call_operand.vmem [shape: f32[1,32], index: 9, kind: input, shape index: {}]
  %s10 = inlined_call_operand.vmem [shape: f32[1,32], index: 10, kind: input, shape index: {}]
  %s11 = inlined_call_operand.hbm [shape: f32[2,8,32], index: 11, kind: output, shape index: {}]
  %s12 = sld [smem:[#allocation0]]
  $region101: #{tpu_custom_call.1} parent=0
    _
  %s14 = ssub.s32 1, %s12
  %s15 = scalar_select 0, %s14, %s12
  $region1: #{tpu_custom_call.1} parent=0
    #allocation2 [shape = 'u8[8192]{0}', space=vmem, size = 0x2000, scoped, tag = 'input window, operand 0']
    #allocation3 [shape = 's32[2]{0}', space=sflag, size = 0x8, scoped, tag = 'scoped memory for tpu_custom_call.1']
    #allocation4 [shape = 's32[2]{0}', space=sflag, size = 0x8, scoped, tag = 'scoped memory for tpu_custom_call.1']
    #allocation5 [shape = 'u8[8192]{0}', space=vmem, size = 0x2000, scoped, tag = 'input window, operand 1']
    #allocation6 [shape = 's32[2]{0}', space=sflag, size = 0x8, scoped, tag = 'scoped memory for tpu_custom_call.1']
    #allocation7 [shape = 'u8[8192]{0}', space=vmem, size = 0x2000, scoped, tag = 'input window, operand 2']
    #allocation8 [shape = 'u8[16384]{0}', space=vmem, size = 0x4000, scoped, tag = 'input window, operand 3, single buffered']
    #allocation9 [shape = 's32[1]{0}', space=sflag, size = 0x4, scoped, tag = 'scoped memory for tpu_custom_call.1']
    #allocation10 [shape = 'u8[16384]{0}', space=vmem, size = 0x4000, scoped, tag = 'input window, operand 5, single buffered']
    #allocation11 [shape = 'u8[16384]{0}', space=vmem, size = 0x4000, scoped, tag = 'input window, operand 7, single buffered']
    #allocation12 [shape = 's32[1]{0}', space=sflag, size = 0x4, scoped, tag = 'scoped memory for tpu_custom_call.1']
    #allocation13 [shape = 'u8[8192]{0}', space=vmem, size = 0x2000, scoped, tag = 'output window, operand 0']
    %16 = vsyncpa [#allocation3], 0
    %s17 = scalar_lea.sflag [#allocation3], 1
    %18 = vsyncpa %s17, 0
    %19 = vsyncpa [#allocation6], 0
    %s20 = scalar_lea.sflag [#allocation6], 1
    %21 = vsyncpa %s20, 0
    %22 = vsyncpa [#allocation9], 0
    %23 = vsyncpa [#allocation12], 0
    %24 = vsyncpa [#allocation4], 0
    %s25 = scalar_lea.sflag [#allocation4], 1
    %26 = vsyncpa %s25, 0
    loop: start=0, step=1, limit=4
    $region2: #{tpu_custom_call.1} parent=1 // loop_pre_header
      _
    $region3: #{tpu_custom_call.1} parent=1 // loop_header
      %s28 = sphi 0, %s32
      %p29 = scmp.ge.s32.totalorder %s28, 4
      %s38 = sphi 0, %s40
      %s41 = sphi 0, %s38
      %s42 = sphi 0, %s41
      %s58 = sphi 0, %s42
      %s64 = sphi 0, %s66
      %s67 = sphi 0, %s64
      %s68 = sphi 0, %s67
      %s84 = sphi 0, %s68
      %s90 = sphi 0, %s92
      %s93 = sphi 0, %s90
      %s94 = sphi 0, %s93
      %s110 = sphi 0, %s94
      %s114 = sphi 0, %s114
      %s116 = sphi 0, %s114
      %s117 = sphi 0, %s116
      %s131 = sphi 0, %s117
      %s135 = sphi 0, %s135
      %s137 = sphi 0, %s135
      %s138 = sphi 0, %s137
      %s152 = sphi 0, %s138
      %s156 = sphi 0, %s156
      %s158 = sphi 0, %s156
      %s159 = sphi 0, %s158
      %s173 = sphi 0, %s159
      %s177 = sphi 0, %s177
      %s179 = sphi 0, %s177
      %s180 = sphi 0, %s179
      %s194 = sphi 0, %s180
      %s198 = sphi 0, %s198
      %s200 = sphi 0, %s198
      %s201 = sphi 0, %s200
      %s215 = sphi 0, %s201
      %s219 = sphi 0, %s219
      %s221 = sphi 0, %s219
      %s222 = sphi 0, %s221
      %s236 = sphi 0, %s222
      %s240 = sphi 0, %s240
      %s242 = sphi 0, %s240
      %s243 = sphi 0, %s242
      %s257 = sphi 0, %s243
      %s261 = sphi 0, %s261
      %s263 = sphi 0, %s261
      %s264 = sphi 0, %s263
      %s278 = sphi 0, %s264
      %s284 = sphi 0, %s286
      %s287 = sphi 0, %s284
      %s288 = sphi 0, %s287
      %s304 = sphi 0, %s288
    $region4: #{tpu_custom_call.1} parent=1 // loop_header_branch
      %31 = sbr.rel (%p29) target = $region8
    $region5: #{tpu_custom_call.1} parent=1 // loop_body
      %s33 = ssub.s32 %s28, 1
      %s34 = ssub.s32 %s28, 2
      %s35 = sadd.s32 %s28, 1
      %s36 = ssub.s32 %s28, %s35
      %p37 = scmp.eq.s32.totalorder %s36, 0
      %s39 = sadd.s32 %s38, 1
      %s40 = scalar_select %p37, %s38, %s39
      %p43 = pneg %p37
      %p44 = scmp.eq.s32.totalorder %s28, 1
      %p45 = por %p43, %p44
      %p46 = scmp.ne.s32.totalorder %s38, %s41
      %p47 = scmp.eq.s32.totalorder %s28, 0
      %p48 = por %p46, %p47
      %p49 = scmp.ne.s32.totalorder %s38, %s41
      %p50 = scmp.eq.s32.totalorder %s33, 1
      %p51 = por %p49, %p50
      %p52 = scmp.ne.s32.totalorder %s41, %s42
      %p53 = scmp.eq.s32.totalorder %s33, 0
      %p54 = por %p52, %p53
      %p55 = scmp.ne.s32.totalorder %s41, %s42
      %p56 = scmp.eq.s32.totalorder %s34, 1
      %p57 = por %p55, %p56
      %p59 = scmp.ne.s32.totalorder %s42, %s58
      %p60 = scmp.eq.s32.totalorder %s34, 0
      %p61 = por %p59, %p60
      %s62 = ssub.s32 %s28, %s35
      %p63 = scmp.eq.s32.totalorder %s62, 0
      %s65 = sadd.s32 %s64, 1
      %s66 = scalar_select %p63, %s64, %s65
      %p69 = pneg %p63
      %p70 = scmp.eq.s32.totalorder %s28, 1
      %p71 = por %p69, %p70
      %p72 = scmp.ne.s32.totalorder %s64, %s67
      %p73 = scmp.eq.s32.totalorder %s28, 0
      %p74 = por %p72, %p73
      %p75 = scmp.ne.s32.totalorder %s64, %s67
      %p76 = scmp.eq.s32.totalorder %s33, 1
      %p77 = por %p75, %p76
      %p78 = scmp.ne.s32.totalorder %s67, %s68
      %p79 = scmp.eq.s32.totalorder %s33, 0
      %p80 = por %p78, %p79
      %p81 = scmp.ne.s32.totalorder %s67, %s68
      %p82 = scmp.eq.s32.totalorder %s34, 1
      %p83 = por %p81, %p82
      %p85 = scmp.ne.s32.totalorder %s68, %s84
      %p86 = scmp.eq.s32.totalorder %s34, 0
      %p87 = por %p85, %p86
      %s88 = ssub.s32 %s28, %s35
      %p89 = scmp.eq.s32.totalorder %s88, 0
      %s91 = sadd.s32 %s90, 1
      %s92 = scalar_select %p89, %s90, %s91
      %p95 = pneg %p89
      %p96 = scmp.eq.s32.totalorder %s28, 1
      %p97 = por %p95, %p96
      %p98 = scmp.ne.s32.totalorder %s90, %s93
      %p99 = scmp.eq.s32.totalorder %s28, 0
      %p100 = por %p98, %p99
      %p101 = scmp.ne.s32.totalorder %s90, %s93
      %p102 = scmp.eq.s32.totalorder %s33, 1
      %p103 = por %p101, %p102
      %p104 = scmp.ne.s32.totalorder %s93, %s94
      %p105 = scmp.eq.s32.totalorder %s33, 0
      %p106 = por %p104, %p105
      %p107 = scmp.ne.s32.totalorder %s93, %s94
      %p108 = scmp.eq.s32.totalorder %s34, 1
      %p109 = por %p107, %p108
      %p111 = scmp.ne.s32.totalorder %s94, %s110
      %p112 = scmp.eq.s32.totalorder %s34, 0
      %p113 = por %p111, %p112
      %s115 = sadd.s32 %s114, 1
      %p118 = scmp.eq.s32.totalorder %s28, 1
      %p119 = scmp.ne.s32.totalorder %s114, %s116
      %p120 = scmp.eq.s32.totalorder %s28, 0
      %p121 = por %p119, %p120
      %p122 = scmp.ne.s32.totalorder %s114, %s116
      %p123 = scmp.eq.s32.totalorder %s33, 1
      %p124 = por %p122, %p123
      %p125 = scmp.ne.s32.totalorder %s116, %s117
      %p126 = scmp.eq.s32.totalorder %s33, 0
      %p127 = por %p125, %p126
      %p128 = scmp.ne.s32.totalorder %s116, %s117
      %p129 = scmp.eq.s32.totalorder %s34, 1
      %p130 = por %p128, %p129
      %p132 = scmp.ne.s32.totalorder %s117, %s131
      %p133 = scmp.eq.s32.totalorder %s34, 0
      %p134 = por %p132, %p133
      %s136 = sadd.s32 %s135, 1
      %p139 = scmp.eq.s32.totalorder %s28, 1
      %p140 = scmp.ne.s32.totalorder %s135, %s137
      %p141 = scmp.eq.s32.totalorder %s28, 0
      %p142 = por %p140, %p141
      %p143 = scmp.ne.s32.totalorder %s135, %s137
      %p144 = scmp.eq.s32.totalorder %s33, 1
      %p145 = por %p143, %p144
      %p146 = scmp.ne.s32.totalorder %s137, %s138
      %p147 = scmp.eq.s32.totalorder %s33, 0
      %p148 = por %p146, %p147
      %p149 = scmp.ne.s32.totalorder %s137, %s138
      %p150 = scmp.eq.s32.totalorder %s34, 1
      %p151 = por %p149, %p150
      %p153 = scmp.ne.s32.totalorder %s138, %s152
      %p154 = scmp.eq.s32.totalorder %s34, 0
      %p155 = por %p153, %p154
      %s157 = sadd.s32 %s156, 1
      %p160 = scmp.eq.s32.totalorder %s28, 1
      %p161 = scmp.ne.s32.totalorder %s156, %s158
      %p162 = scmp.eq.s32.totalorder %s28, 0
      %p163 = por %p161, %p162
      %p164 = scmp.ne.s32.totalorder %s156, %s158
      %p165 = scmp.eq.s32.totalorder %s33, 1
      %p166 = por %p164, %p165
      %p167 = scmp.ne.s32.totalorder %s158, %s159
      %p168 = scmp.eq.s32.totalorder %s33, 0
      %p169 = por %p167, %p168
      %p170 = scmp.ne.s32.totalorder %s158, %s159
      %p171 = scmp.eq.s32.totalorder %s34, 1
      %p172 = por %p170, %p171
      %p174 = scmp.ne.s32.totalorder %s159, %s173
      %p175 = scmp.eq.s32.totalorder %s34, 0
      %p176 = por %p174, %p175
      %s178 = sadd.s32 %s177, 1
      %p181 = scmp.eq.s32.totalorder %s28, 1
      %p182 = scmp.ne.s32.totalorder %s177, %s179
      %p183 = scmp.eq.s32.totalorder %s28, 0
      %p184 = por %p182, %p183
      %p185 = scmp.ne.s32.totalorder %s177, %s179
      %p186 = scmp.eq.s32.totalorder %s33, 1
      %p187 = por %p185, %p186
      %p188 = scmp.ne.s32.totalorder %s179, %s180
      %p189 = scmp.eq.s32.totalorder %s33, 0
      %p190 = por %p188, %p189
      %p191 = scmp.ne.s32.totalorder %s179, %s180
      %p192 = scmp.eq.s32.totalorder %s34, 1
      %p193 = por %p191, %p192
      %p195 = scmp.ne.s32.totalorder %s180, %s194
      %p196 = scmp.eq.s32.totalorder %s34, 0
      %p197 = por %p195, %p196
      %s199 = sadd.s32 %s198, 1
      %p202 = scmp.eq.s32.totalorder %s28, 1
      %p203 = scmp.ne.s32.totalorder %s198, %s200
      %p204 = scmp.eq.s32.totalorder %s28, 0
      %p205 = por %p203, %p204
      %p206 = scmp.ne.s32.totalorder %s198, %s200
      %p207 = scmp.eq.s32.totalorder %s33, 1
      %p208 = por %p206, %p207
      %p209 = scmp.ne.s32.totalorder %s200, %s201
      %p210 = scmp.eq.s32.totalorder %s33, 0
      %p211 = por %p209, %p210
      %p212 = scmp.ne.s32.totalorder %s200, %s201
      %p213 = scmp.eq.s32.totalorder %s34, 1
      %p214 = por %p212, %p213
      %p216 = scmp.ne.s32.totalorder %s201, %s215
      %p217 = scmp.eq.s32.totalorder %s34, 0
      %p218 = por %p216, %p217
      %s220 = sadd.s32 %s219, 1
      %p223 = scmp.eq.s32.totalorder %s28, 1
      %p224 = scmp.ne.s32.totalorder %s219, %s221
      %p225 = scmp.eq.s32.totalorder %s28, 0
      %p226 = por %p224, %p225
      %p227 = scmp.ne.s32.totalorder %s219, %s221
      %p228 = scmp.eq.s32.totalorder %s33, 1
      %p229 = por %p227, %p228
      %p230 = scmp.ne.s32.totalorder %s221, %s222
      %p231 = scmp.eq.s32.totalorder %s33, 0
      %p232 = por %p230, %p231
      %p233 = scmp.ne.s32.totalorder %s221, %s222
      %p234 = scmp.eq.s32.totalorder %s34, 1
      %p235 = por %p233, %p234
      %p237 = scmp.ne.s32.totalorder %s222, %s236
      %p238 = scmp.eq.s32.totalorder %s34, 0
      %p239 = por %p237, %p238
      %s241 = sadd.s32 %s240, 1
      %p244 = scmp.eq.s32.totalorder %s28, 1
      %p245 = scmp.ne.s32.totalorder %s240, %s242
      %p246 = scmp.eq.s32.totalorder %s28, 0
      %p247 = por %p245, %p246
      %p248 = scmp.ne.s32.totalorder %s240, %s242
      %p249 = scmp.eq.s32.totalorder %s33, 1
      %p250 = por %p248, %p249
      %p251 = scmp.ne.s32.totalorder %s242, %s243
      %p252 = scmp.eq.s32.totalorder %s33, 0
      %p253 = por %p251, %p252
      %p254 = scmp.ne.s32.totalorder %s242, %s243
      %p255 = scmp.eq.s32.totalorder %s34, 1
      %p256 = por %p254, %p255
      %p258 = scmp.ne.s32.totalorder %s243, %s257
      %p259 = scmp.eq.s32.totalorder %s34, 0
      %p260 = por %p258, %p259
      %s262 = sadd.s32 %s261, 1
      %p265 = scmp.eq.s32.totalorder %s28, 1
      %p266 = scmp.ne.s32.totalorder %s261, %s263
      %p267 = scmp.eq.s32.totalorder %s28, 0
      %p268 = por %p266, %p267
      %p269 = scmp.ne.s32.totalorder %s261, %s263
      %p270 = scmp.eq.s32.totalorder %s33, 1
      %p271 = por %p269, %p270
      %p272 = scmp.ne.s32.totalorder %s263, %s264
      %p273 = scmp.eq.s32.totalorder %s33, 0
      %p274 = por %p272, %p273
      %p275 = scmp.ne.s32.totalorder %s263, %s264
      %p276 = scmp.eq.s32.totalorder %s34, 1
      %p277 = por %p275, %p276
      %p279 = scmp.ne.s32.totalorder %s264, %s278
      %p280 = scmp.eq.s32.totalorder %s34, 0
      %p281 = por %p279, %p280
      %s282 = ssub.s32 %s28, %s35
      %p283 = scmp.eq.s32.totalorder %s282, 0
      %s285 = sadd.s32 %s284, 1
      %s286 = scalar_select %p283, %s284, %s285
      %p289 = pneg %p283
      %p290 = scmp.eq.s32.totalorder %s28, 1
      %p291 = por %p289, %p290
      %p292 = scmp.ne.s32.totalorder %s284, %s287
      %p293 = scmp.eq.s32.totalorder %s28, 0
      %p294 = por %p292, %p293
      %p295 = scmp.ne.s32.totalorder %s284, %s287
      %p296 = scmp.eq.s32.totalorder %s33, 1
      %p297 = por %p295, %p296
      %p298 = scmp.ne.s32.totalorder %s287, %s288
      %p299 = scmp.eq.s32.totalorder %s33, 0
      %p300 = por %p298, %p299
      %p301 = scmp.ne.s32.totalorder %s287, %s288
      %p302 = scmp.eq.s32.totalorder %s34, 1
      %p303 = por %p301, %p302
      %p305 = scmp.ne.s32.totalorder %s288, %s304
      %p306 = scmp.eq.s32.totalorder %s34, 0
      %p307 = por %p305, %p306
      %p308 = scmp.le.s32.totalorder 1, %s28
      %p309 = scmp.lt.s32.totalorder %s28, 3
      %p310 = pnand %p308, %p309
      %p311 = pneg %p310
      // Predicated region
      $region9: #{tpu_custom_call.1} parent=5 // pred_check
        _
      $region10: #{tpu_custom_call.1} parent=5 // pred_check_branch
        %313 = sbr.rel (%p310) target = $region12
      $region11: #{tpu_custom_call.1} parent=5 // pred_region
        %s314 = ssub.s32 %s28, 1
        // Predicated region
        $region13: #{tpu_custom_call.1} parent=11 // pred_check
          %p315 = pneg %p127
        $region14: #{tpu_custom_call.1} parent=11 // pred_check_branch
          %317 = sbr.rel (%p315) target = $region16
        $region15: #{tpu_custom_call.1} parent=11 // pred_region
          %s319 = ssub.s32 512, 512
          %320 = vsyncadd [#allocation9], %s319
          %s321 = sshll.u32 [#allocation8], 4
          %s322 = int_to_ptr.vmem [resolvable:$true] %s321
          %327 = dma.hbm_to_vmem [thread:$0]  %s3, 512, %s322, [#allocation9], 128, 128, 8
        $region16: #{tpu_custom_call.1} parent=11 // pred_fallthru
          _
        // Predicated region
        $region17: #{tpu_custom_call.1} parent=11 // pred_check
          %p328 = pneg %p148
        $region18: #{tpu_custom_call.1} parent=11 // pred_check_branch
          %330 = sbr.rel (%p328) target = $region20
        $region19: #{tpu_custom_call.1} parent=11 // pred_region
          _
        $region20: #{tpu_custom_call.1} parent=11 // pred_fallthru
          _
        // Predicated region
        $region21: #{tpu_custom_call.1} parent=11 // pred_check
          %p331 = pneg %p169
        $region22: #{tpu_custom_call.1} parent=11 // pred_check_branch
          %333 = sbr.rel (%p331) target = $region24
        $region23: #{tpu_custom_call.1} parent=11 // pred_region
          %s335 = ssub.s32 512, 512
          %336 = vsyncadd [#allocation9], %s335
          %s337 = sshll.u32 [#allocation10], 4
          %s338 = int_to_ptr.vmem [resolvable:$true] %s337
          %343 = dma.hbm_to_vmem [thread:$0]  %s5, 512, %s338, [#allocation9], 128, 128, 8
        $region24: #{tpu_custom_call.1} parent=11 // pred_fallthru
          _
        // Predicated region
        $region25: #{tpu_custom_call.1} parent=11 // pred_check
          %p344 = pneg %p190
        $region26: #{tpu_custom_call.1} parent=11 // pred_check_branch
          %346 = sbr.rel (%p344) target = $region28
        $region27: #{tpu_custom_call.1} parent=11 // pred_region
          _
        $region28: #{tpu_custom_call.1} parent=11 // pred_fallthru
          _
        // Predicated region
        $region29: #{tpu_custom_call.1} parent=11 // pred_check
          %p347 = pneg %p211
        $region30: #{tpu_custom_call.1} parent=11 // pred_check_branch
          %349 = sbr.rel (%p347) target = $region32
        $region31: #{tpu_custom_call.1} parent=11 // pred_region
          %s351 = ssub.s32 512, 512
          %352 = vsyncadd [#allocation12], %s351
          %s353 = sshll.u32 [#allocation11], 4
          %s354 = int_to_ptr.vmem [resolvable:$true] %s353
          %359 = dma.hbm_to_vmem [thread:$0]  %s7, 512, %s354, [#allocation12], 128, 128, 8
        $region32: #{tpu_custom_call.1} parent=11 // pred_fallthru
          _
        // Predicated region
        $region33: #{tpu_custom_call.1} parent=11 // pred_check
          %p360 = pneg %p232
        $region34: #{tpu_custom_call.1} parent=11 // pred_check_branch
          %362 = sbr.rel (%p360) target = $region36
        $region35: #{tpu_custom_call.1} parent=11 // pred_region
          _
        $region36: #{tpu_custom_call.1} parent=11 // pred_fallthru
          _
        // Predicated region
        $region37: #{tpu_custom_call.1} parent=11 // pred_check
          %p363 = pneg %p253
        $region38: #{tpu_custom_call.1} parent=11 // pred_check_branch
          %365 = sbr.rel (%p363) target = $region40
        $region39: #{tpu_custom_call.1} parent=11 // pred_region
          _
        $region40: #{tpu_custom_call.1} parent=11 // pred_fallthru
          _
        // Predicated region
        $region41: #{tpu_custom_call.1} parent=11 // pred_check
          %p366 = pneg %p274
        $region42: #{tpu_custom_call.1} parent=11 // pred_check_branch
          %368 = sbr.rel (%p366) target = $region44
        $region43: #{tpu_custom_call.1} parent=11 // pred_region
          _
        $region44: #{tpu_custom_call.1} parent=11 // pred_fallthru
          _
      $region12: #{tpu_custom_call.1} parent=5 // pred_fallthru
        _
      %p369 = scmp.lt.s32.totalorder %s28, 2
      // Predicated region
      $region45: #{tpu_custom_call.1} parent=5 // pred_check
        %p370 = pneg %p369
      $region46: #{tpu_custom_call.1} parent=5 // pred_check_branch
        %372 = sbr.rel (%p370) target = $region48
      $region47: #{tpu_custom_call.1} parent=5 // pred_region
        // Predicated region
        $region49: #{tpu_custom_call.1} parent=47 // pred_check
          %p373 = pneg %p48
        $region50: #{tpu_custom_call.1} parent=47 // pred_check_branch
          %375 = sbr.rel (%p373) target = $region52
        $region51: #{tpu_custom_call.1} parent=47 // pred_region
          %s376 = sand.u32 %s38, 1
          %s377 = scalar_lea.sflag [#allocation3], %s376
          %s378 = sand.u32 %s38, 1
          %s379 = smul.addr %s378, 8
          %s380 = scalar_lea.vmem [#allocation2], %s379
          %s382 = ssub.s32 128, 128
          %383 = vsyncadd %s377, %s382
          %s384 = smul.addr %s28, 128
          %s385 = scalar_lea.hbm %s0, %s384
          %s387 = sshll.u32 %s380, 4
          %s388 = int_to_ptr.vmem [resolvable:$true] %s387
          %390 = dma.hbm_to_vmem [thread:$0]  %s385, 128, %s388, %s377
        $region52: #{tpu_custom_call.1} parent=47 // pred_fallthru
          _
        // Predicated region
        $region53: #{tpu_custom_call.1} parent=47 // pred_check
          %p391 = pneg %p74
        $region54: #{tpu_custom_call.1} parent=47 // pred_check_branch
          %393 = sbr.rel (%p391) target = $region56
        $region55: #{tpu_custom_call.1} parent=47 // pred_region
          %s394 = sand.u32 %s28, 1
          %s395 = scalar_lea.sflag [#allocation6], %s394
          %s396 = sand.u32 %s64, 1
          %s397 = smul.addr %s396, 8
          %s398 = scalar_lea.vmem [#allocation5], %s397
          %s400 = ssub.s32 128, 128
          %401 = vsyncadd %s395, %s400
          %s402 = smul.addr %s28, 128
          %s403 = scalar_lea.hbm %s1, %s402
          %s405 = sshll.u32 %s398, 4
          %s406 = int_to_ptr.vmem [resolvable:$true] %s405
          %408 = dma.hbm_to_vmem [thread:$0]  %s403, 128, %s406, %s395
        $region56: #{tpu_custom_call.1} parent=47 // pred_fallthru
          _
        // Predicated region
        $region57: #{tpu_custom_call.1} parent=47 // pred_check
          %p409 = pneg %p100
        $region58: #{tpu_custom_call.1} parent=47 // pred_check_branch
          %411 = sbr.rel (%p409) target = $region60
        $region59: #{tpu_custom_call.1} parent=47 // pred_region
          %s412 = sand.u32 %s28, 1
          %s413 = scalar_lea.sflag [#allocation6], %s412
          %s414 = sand.u32 %s90, 1
          %s415 = smul.addr %s414, 8
          %s416 = scalar_lea.vmem [#allocation7], %s415
          %s418 = ssub.s32 128, 128
          %419 = vsyncadd %s413, %s418
          %s420 = smul.addr %s28, 128
          %s421 = scalar_lea.hbm %s2, %s420
          %s423 = sshll.u32 %s416, 4
          %s424 = int_to_ptr.vmem [resolvable:$true] %s423
          %426 = dma.hbm_to_vmem [thread:$0]  %s421, 128, %s424, %s413
        $region60: #{tpu_custom_call.1} parent=47 // pred_fallthru
          _
      $region48: #{tpu_custom_call.1} parent=5 // pred_fallthru
        _
      %p427 = scmp.le.s32.totalorder 1, %s28
      %p428 = scmp.lt.s32.totalorder %s28, 3
      %p429 = pnand %p427, %p428
      %p430 = pneg %p429
      // Predicated region
      $region61: #{tpu_custom_call.1} parent=5 // pred_check
        _
      $region62: #{tpu_custom_call.1} parent=5 // pred_check_branch
        %432 = sbr.rel (%p429) target = $region64
      $region63: #{tpu_custom_call.1} parent=5 // pred_region
        %s433 = ssub.s32 %s28, 1
        %s434 = sand.u32 %s41, 1
        %s435 = scalar_lea.sflag [#allocation3], %s434
        %s436 = sand.u32 %s41, 1
        %s437 = smul.addr %s436, 8
        %s438 = scalar_lea.vmem [#allocation2], %s437
        // Predicated region
        $region65: #{tpu_custom_call.1} parent=63 // pred_check
          %p439 = pneg %p54
        $region66: #{tpu_custom_call.1} parent=63 // pred_check_branch
          %441 = sbr.rel (%p439) target = $region68
        $region67: #{tpu_custom_call.1} parent=63 // pred_region
          %442 = dma.done %s435, 128
        $region68: #{tpu_custom_call.1} parent=63 // pred_fallthru
          _
        %s443 = sand.u32 %s33, 1
        %s444 = scalar_lea.sflag [#allocation6], %s443
        %s445 = sand.u32 %s67, 1
        %s446 = smul.addr %s445, 8
        %s447 = scalar_lea.vmem [#allocation5], %s446
        // Predicated region
        $region69: #{tpu_custom_call.1} parent=63 // pred_check
          %p448 = pneg %p80
        $region70: #{tpu_custom_call.1} parent=63 // pred_check_branch
          %450 = sbr.rel (%p448) target = $region72
        $region71: #{tpu_custom_call.1} parent=63 // pred_region
          %451 = dma.done %s444, 128
        $region72: #{tpu_custom_call.1} parent=63 // pred_fallthru
          _
        %s452 = sand.u32 %s33, 1
        %s453 = scalar_lea.sflag [#allocation6], %s452
        %s454 = sand.u32 %s93, 1
        %s455 = smul.addr %s454, 8
        %s456 = scalar_lea.vmem [#allocation7], %s455
        // Predicated region
        $region73: #{tpu_custom_call.1} parent=63 // pred_check
          %p457 = pneg %p106
        $region74: #{tpu_custom_call.1} parent=63 // pred_check_branch
          %459 = sbr.rel (%p457) target = $region76
        $region75: #{tpu_custom_call.1} parent=63 // pred_region
          %460 = dma.done %s453, 128
        $region76: #{tpu_custom_call.1} parent=63 // pred_fallthru
          _
        // Predicated region
        $region77: #{tpu_custom_call.1} parent=63 // pred_check
          %p461 = pneg %p127
        $region78: #{tpu_custom_call.1} parent=63 // pred_check_branch
          %463 = sbr.rel (%p461) target = $region80
        $region79: #{tpu_custom_call.1} parent=63 // pred_region
          %464 = dma.done [#allocation9], 512
        $region80: #{tpu_custom_call.1} parent=63 // pred_fallthru
          _
        // Predicated region
        $region81: #{tpu_custom_call.1} parent=63 // pred_check
          %p465 = pneg %p169
        $region82: #{tpu_custom_call.1} parent=63 // pred_check_branch
          %467 = sbr.rel (%p465) target = $region84
        $region83: #{tpu_custom_call.1} parent=63 // pred_region
          %468 = dma.done [#allocation9], 512
        $region84: #{tpu_custom_call.1} parent=63 // pred_fallthru
          _
        // Predicated region
        $region85: #{tpu_custom_call.1} parent=63 // pred_check
          %p469 = pneg %p211
        $region86: #{tpu_custom_call.1} parent=63 // pred_check_branch
          %471 = sbr.rel (%p469) target = $region88
        $region87: #{tpu_custom_call.1} parent=63 // pred_region
          %472 = dma.done [#allocation12], 512
        $region88: #{tpu_custom_call.1} parent=63 // pred_fallthru
          _
        %s473 = sand.u32 %s41, 1
        %s474 = scalar_lea.sflag [#allocation3], %s473
        %s475 = sand.u32 %s41, 1
        %s476 = smul.addr %s475, 8
        %s477 = scalar_lea.vmem [#allocation2], %s476
        %p478 = pneg %p54
        %p479 = pneg %p51
        %s480 = sand.u32 %s33, 1
        %s481 = scalar_lea.sflag [#allocation6], %s480
        %s482 = sand.u32 %s67, 1
        %s483 = smul.addr %s482, 8
        %s484 = scalar_lea.vmem [#allocation5], %s483
        %p485 = pneg %p80
        %p486 = pneg %p77
        %s487 = sand.u32 %s33, 1
        %s488 = scalar_lea.sflag [#allocation6], %s487
        %s489 = sand.u32 %s93, 1
        %s490 = smul.addr %s489, 8
        %s491 = scalar_lea.vmem [#allocation7], %s490
        %p492 = pneg %p106
        %p493 = pneg %p103
        %p494 = pneg %p127
        %p495 = pneg %p124
        %p496 = pneg %p148
        %p497 = pneg %p145
        %p498 = pneg %p169
        %p499 = pneg %p166
        %p500 = pneg %p190
        %p501 = pneg %p187
        %p502 = pneg %p211
        %p503 = pneg %p208
        %p504 = pneg %p232
        %p505 = pneg %p229
        %p506 = pneg %p253
        %p507 = pneg %p250
        %p508 = pneg %p274
        %p509 = pneg %p271
        %p510 = pneg %p300
        %p511 = pneg %p297
        %s512 = sand.u32 %s287, 1
        %s513 = scalar_lea.sflag [#allocation4], %s512
        %s514 = sand.u32 %s287, 1
        %s515 = smul.addr %s514, 8
        %s516 = scalar_lea.vmem [#allocation13], %s515
        %v518 = vld [vmem:[%s438] sm:$0xff]
        %v519 = vld [vmem:[%s447] sm:$0xff]
        %v520 = vld [vmem:[%s456] sm:$0xff]
        %v521 = vpack.c.bf16 %v518, %v518
        %v522 = vld [vmem:[#allocation8] sm:$0xff]
        %v523 = vld [vmem:[#allocation8 + $0x8] sm:$0xff]
        %v524 = vld [vmem:[#allocation8 + $0x10] sm:$0xff]
        %v525 = vld [vmem:[#allocation8 + $0x18] sm:$0xff]
        %v526 = vpack.c.bf16 %v523, %v522
        %v527 = vpack.c.bf16 %v525, %v524
        %v528 = vld [vmem:[%s4] sm:$0x1]
        %v530 = vlaneseq
        %v531 = vshrl.u32 %v530, 7
        %v532 = vsub.s32 0, %v531
        %v533 = vrot.slane %v528, %v532
        %vm535 = vcmask 261120
        %v537 = vsel %vm535, %v521, 0
        %539 = vmatprep.subr.bf16.mxu0 0
        %540 = vmatpush1.bf16.msra.mxu0 %v526
        %541 = vmatprep.subr.bf16.mxu0 0
        %542 = vmatpush1.bf16.msra.mxu0 %v527
        %543 = vmatprep.subr.bf16.mxu0 0
        %544 = vmatpush1.bf16.msra.mxu0 0
        %545 = vmatprep.subr.bf16.mxu0 0
        %546 = vmatpush1.bf16.msra.mxu0 0
        %547 = vmatprep.subr.bf16.mxu0 0
        %548 = vmatpush1.bf16.msra.mxu0 0
        %549 = vmatprep.subr.bf16.mxu0 0
        %550 = vmatpush1.bf16.msra.mxu0 0
        %551 = vmatprep.subr.bf16.mxu0 0
        %552 = vmatpush1.bf16.msra.mxu0 0
        %553 = vmatprep.subr.bf16.mxu0 0
        %554 = vmatpush1.bf16.msra.mxu0 0
        %555 = vmatprep.subr.bf16.mxu0 0
        %556 = vmatpush1.bf16.msra.mxu0 0
        %557 = vmatprep.subr.bf16.mxu0 0
        %558 = vmatpush1.bf16.msra.mxu0 0
        %559 = vmatprep.subr.bf16.mxu0 0
        %560 = vmatpush1.bf16.msra.mxu0 0
        %561 = vmatprep.subr.bf16.mxu0 0
        %562 = vmatpush1.bf16.msra.mxu0 0
        %563 = vmatprep.subr.bf16.mxu0 0
        %564 = vmatpush1.bf16.msra.mxu0 0
        %565 = vmatprep.subr.bf16.mxu0 0
        %566 = vmatpush1.bf16.msra.mxu0 0
        %567 = vmatprep.subr.bf16.mxu0 0
        %568 = vmatpush1.bf16.msra.mxu0 0
        %569 = vmatprep.subr.bf16.mxu0 0
        %570 = vmatpush1.bf16.msra.mxu0 0
        %571 = vmatprep.mubr.bf16.mxu0 0
        %572 = vmatmul.mubr.bf16.gmra.mrb[0].mxu0 %v537
        %v573 = vpop.f32.mrb[0].mxu0
        %v574 = vadd.f32 %v533, %v573
        %v575 = vpop.f32.mrb[0].mxu0
        %v576 = vpop.f32.mrb[0].mxu0
        %v577 = vpop.f32.mrb[0].mxu0
        %578 = vdwg.mxu0
        %v579 = vpack.c.bf16 %v519, %v519
        %v580 = vld [vmem:[#allocation10] sm:$0xff]
        %v581 = vld [vmem:[#allocation10 + $0x8] sm:$0xff]
        %v582 = vld [vmem:[#allocation10 + $0x10] sm:$0xff]
        %v583 = vld [vmem:[#allocation10 + $0x18] sm:$0xff]
        %v584 = vpack.c.bf16 %v581, %v580
        %v585 = vpack.c.bf16 %v583, %v582
        %v586 = vld [vmem:[%s6] sm:$0x1]
        %v588 = vlaneseq
        %v589 = vshrl.u32 %v588, 7
        %v590 = vsub.s32 0, %v589
        %v591 = vrot.slane %v586, %v590
        %v594 = vsel %vm535, %v579, 0
        %596 = vmatprep.subr.bf16.mxu0 0
        %597 = vmatpush1.bf16.msra.mxu0 %v584
        %598 = vmatprep.subr.bf16.mxu0 0
        %599 = vmatpush1.bf16.msra.mxu0 %v585
        %600 = vmatprep.subr.bf16.mxu0 0
        %601 = vmatpush1.bf16.msra.mxu0 0
        %602 = vmatprep.subr.bf16.mxu0 0
        %603 = vmatpush1.bf16.msra.mxu0 0
        %604 = vmatprep.subr.bf16.mxu0 0
        %605 = vmatpush1.bf16.msra.mxu0 0
        %606 = vmatprep.subr.bf16.mxu0 0
        %607 = vmatpush1.bf16.msra.mxu0 0
        %608 = vmatprep.subr.bf16.mxu0 0
        %609 = vmatpush1.bf16.msra.mxu0 0
        %610 = vmatprep.subr.bf16.mxu0 0
        %611 = vmatpush1.bf16.msra.mxu0 0
        %612 = vmatprep.subr.bf16.mxu0 0
        %613 = vmatpush1.bf16.msra.mxu0 0
        %614 = vmatprep.subr.bf16.mxu0 0
        %615 = vmatpush1.bf16.msra.mxu0 0
        %616 = vmatprep.subr.bf16.mxu0 0
        %617 = vmatpush1.bf16.msra.mxu0 0
        %618 = vmatprep.subr.bf16.mxu0 0
        %619 = vmatpush1.bf16.msra.mxu0 0
        %620 = vmatprep.subr.bf16.mxu0 0
        %621 = vmatpush1.bf16.msra.mxu0 0
        %622 = vmatprep.subr.bf16.mxu0 0
        %623 = vmatpush1.bf16.msra.mxu0 0
        %624 = vmatprep.subr.bf16.mxu0 0
        %625 = vmatpush1.bf16.msra.mxu0 0
        %626 = vmatprep.subr.bf16.mxu0 0
        %627 = vmatpush1.bf16.msra.mxu0 0
        %628 = vmatprep.mubr.bf16.mxu0 0
        %629 = vmatmul.mubr.bf16.gmra.mrb[0].mxu0 %v594
        %v630 = vpop.f32.mrb[0].mxu0
        %v631 = vadd.f32 %v591, %v630
        %v632 = vpop.f32.mrb[0].mxu0
        %v633 = vpop.f32.mrb[0].mxu0
        %v634 = vpop.f32.mrb[0].mxu0
        %635 = vdwg.mxu0
        %vm636 = vcmask 64512
        %v638 = vsel %vm636, %v574, 0
        %v641 = vsel %vm636, %v631, 0
        %643 = vmatprep.subr.mxu0 0.0
        %644 = vmatpush1.xpose.msra.mxu0 %v641
        %645 = vmatprep.subr.mxu0 0.0
        %646 = vmatpush1.xpose.msra.mxu0 0.0
        %647 = vmatprep.subr.mxu0 0.0
        %648 = vmatpush1.xpose.msra.mxu0 0.0
        %649 = vmatprep.subr.mxu0 0.0
        %650 = vmatpush1.xpose.msra.mxu0 0.0
        %651 = vmatprep.subr.mxu0 0.0
        %652 = vmatpush1.xpose.msra.mxu0 0.0
        %653 = vmatprep.subr.mxu0 0.0
        %654 = vmatpush1.xpose.msra.mxu0 0.0
        %655 = vmatprep.subr.mxu0 0.0
        %656 = vmatpush1.xpose.msra.mxu0 0.0
        %657 = vmatprep.subr.mxu0 0.0
        %658 = vmatpush1.xpose.msra.mxu0 0.0
        %659 = vmatprep.subr.mxu0 0.0
        %660 = vmatpush1.xpose.msra.mxu0 0.0
        %661 = vmatprep.subr.mxu0 0.0
        %662 = vmatpush1.xpose.msra.mxu0 0.0
        %663 = vmatprep.subr.mxu0 0.0
        %664 = vmatpush1.xpose.msra.mxu0 0.0
        %665 = vmatprep.subr.mxu0 0.0
        %666 = vmatpush1.xpose.msra.mxu0 0.0
        %667 = vmatprep.subr.mxu0 0.0
        %668 = vmatpush1.xpose.msra.mxu0 0.0
        %669 = vmatprep.subr.mxu0 0.0
        %670 = vmatpush1.xpose.msra.mxu0 0.0
        %671 = vmatprep.subr.mxu0 0.0
        %672 = vmatpush1.xpose.msra.mxu0 0.0
        %673 = vmatprep.subr.mxu0 0.0
        %674 = vmatpush1.xpose.msra.mxu0 0.0
        %675 = vmatprep.subr.mxu0 0.0
        %676 = vmatpush1.xpose.msra.mxu0 0.0
        %677 = vmatprep.subr.mxu0 0.0
        %678 = vmatpush1.xpose.msra.mxu0 0.0
        %679 = vmatprep.subr.mxu0 0.0
        %680 = vmatpush1.xpose.msra.mxu0 0.0
        %681 = vmatprep.subr.mxu0 0.0
        %682 = vmatpush1.xpose.msra.mxu0 0.0
        %683 = vmatprep.subr.mxu0 0.0
        %684 = vmatpush1.xpose.msra.mxu0 0.0
        %685 = vmatprep.subr.mxu0 0.0
        %686 = vmatpush1.xpose.msra.mxu0 0.0
        %687 = vmatprep.subr.mxu0 0.0
        %688 = vmatpush1.xpose.msra.mxu0 0.0
        %689 = vmatprep.subr.mxu0 0.0
        %690 = vmatpush1.xpose.msra.mxu0 0.0
        %691 = vmatprep.subr.mxu0 0.0
        %692 = vmatpush1.xpose.msra.mxu0 0.0
        %693 = vmatprep.subr.mxu0 0.0
        %694 = vmatpush1.xpose.msra.mxu0 0.0
        %695 = vmatprep.subr.mxu0 0.0
        %696 = vmatpush1.xpose.msra.mxu0 0.0
        %697 = vmatprep.subr.mxu0 0.0
        %698 = vmatpush1.xpose.msra.mxu0 0.0
        %699 = vmatprep.subr.mxu0 0.0
        %700 = vmatpush1.xpose.msra.mxu0 0.0
        %701 = vmatprep.subr.mxu0 0.0
        %702 = vmatpush1.xpose.msra.mxu0 0.0
        %703 = vmatprep.subr.mxu0 0.0
        %704 = vmatpush1.xpose.msra.mxu0 0.0
        %705 = vmatprep.subr.mxu0 0.0
        %706 = vmatpush1.xpose.msra.mxu0 0.0
        %707 = vmatprep.mubr.f32.mxu0 0.0
        %708 = vmatmul.mubr.f32.gmra.mrb[0].mxu0 %v638
        %v709 = vpop.f32.mrb[0].mxu0
        %v710 = vadd.f32 0.0, %v709
        %v711 = vpop.f32.mrb[0].mxu0
        %712 = vdwg.mxu0
        %v713 = vmul.f32 %v710, 0.35355338
        %v714 = vadd.f32 %v713, %v520
        %v715 = vsel %vm636, %v714, -inf
        %716 = vmax.xlane.f32.xlu0 %v715
        %v717 = vpop.xlane.xlu0 %716
        %v718 = vsub.f32 %v714, %v717
        %v719 = vmul.f32 %v718, 1.442695
        %v720 = vpow.pop %v719
        %v721 = vsel %vm636, %v720, 0.0
        %722 = vadd.xlane.f32.xlu0 %v721
        %v723 = vpop.xlane.xlu0 %722
        %v724 = vrcp.pop %v723
        %v725 = vmul.f32 %v720, %v724
        %726 = vrot.lane.b32.xlu0 %v631, 96
        %v727 = vpop.permute.xlu0 %726
        %v730 = vsel %vm636, %v725, 0
        %732 = vmatprep.subr.mxu0 0.0
        %733 = vmatpush1.msra.mxu0 %v727
        %734 = vmatprep.subr.mxu0 0.0
        %735 = vmatpush1.msra.mxu0 0.0
        %736 = vmatprep.subr.mxu0 0.0
        %737 = vmatpush1.msra.mxu0 0.0
        %738 = vmatprep.subr.mxu0 0.0
        %739 = vmatpush1.msra.mxu0 0.0
        %740 = vmatprep.subr.mxu0 0.0
        %741 = vmatpush1.msra.mxu0 0.0
        %742 = vmatprep.subr.mxu0 0.0
        %743 = vmatpush1.msra.mxu0 0.0
        %744 = vmatprep.subr.mxu0 0.0
        %745 = vmatpush1.msra.mxu0 0.0
        %746 = vmatprep.subr.mxu0 0.0
        %747 = vmatpush1.msra.mxu0 0.0
        %748 = vmatprep.subr.mxu0 0.0
        %749 = vmatpush1.msra.mxu0 0.0
        %750 = vmatprep.subr.mxu0 0.0
        %751 = vmatpush1.msra.mxu0 0.0
        %752 = vmatprep.subr.mxu0 0.0
        %753 = vmatpush1.msra.mxu0 0.0
        %754 = vmatprep.subr.mxu0 0.0
        %755 = vmatpush1.msra.mxu0 0.0
        %756 = vmatprep.subr.mxu0 0.0
        %757 = vmatpush1.msra.mxu0 0.0
        %758 = vmatprep.subr.mxu0 0.0
        %759 = vmatpush1.msra.mxu0 0.0
        %760 = vmatprep.subr.mxu0 0.0
        %761 = vmatpush1.msra.mxu0 0.0
        %762 = vmatprep.subr.mxu0 0.0
        %763 = vmatpush1.msra.mxu0 0.0
        %764 = vmatprep.subr.mxu0 0.0
        %765 = vmatpush1.msra.mxu0 0.0
        %766 = vmatprep.subr.mxu0 0.0
        %767 = vmatpush1.msra.mxu0 0.0
        %768 = vmatprep.subr.mxu0 0.0
        %769 = vmatpush1.msra.mxu0 0.0
        %770 = vmatprep.subr.mxu0 0.0
        %771 = vmatpush1.msra.mxu0 0.0
        %772 = vmatprep.subr.mxu0 0.0
        %773 = vmatpush1.msra.mxu0 0.0
        %774 = vmatprep.subr.mxu0 0.0
        %775 = vmatpush1.msra.mxu0 0.0
        %776 = vmatprep.subr.mxu0 0.0
        %777 = vmatpush1.msra.mxu0 0.0
        %778 = vmatprep.subr.mxu0 0.0
        %779 = vmatpush1.msra.mxu0 0.0
        %780 = vmatprep.subr.mxu0 0.0
        %781 = vmatpush1.msra.mxu0 0.0
        %782 = vmatprep.subr.mxu0 0.0
        %783 = vmatpush1.msra.mxu0 0.0
        %784 = vmatprep.subr.mxu0 0.0
        %785 = vmatpush1.msra.mxu0 0.0
        %786 = vmatprep.subr.mxu0 0.0
        %787 = vmatpush1.msra.mxu0 0.0
        %788 = vmatprep.subr.mxu0 0.0
        %789 = vmatpush1.msra.mxu0 0.0
        %790 = vmatprep.subr.mxu0 0.0
        %791 = vmatpush1.msra.mxu0 0.0
        %792 = vmatprep.subr.mxu0 0.0
        %793 = vmatpush1.msra.mxu0 0.0
        %794 = vmatprep.subr.mxu0 0.0
        %795 = vmatpush1.msra.mxu0 0.0
        %796 = vmatprep.mubr.f32.mxu0 0.0
        %797 = vmatmul.mubr.f32.gmra.mrb[0].mxu0 %v730
        %v798 = vpop.f32.mrb[0].mxu0
        %v799 = vadd.f32 0.0, %v798
        %v800 = vpop.f32.mrb[0].mxu0
        %801 = vdwg.mxu0
        %802 = vrot.lane.b32.xlu0 %v574, 120
        %v803 = vpop.permute.xlu0 %802
        %804 = vrot.lane.b32.xlu0 %v631, 120
        %v805 = vpop.permute.xlu0 %804
        %v806 = vsel %vm636, %v803, 0
        %v808 = vsel %vm636, %v805, 0
        %810 = vmatprep.subr.mxu0 0.0
        %811 = vmatpush1.xpose.msra.mxu0 %v808
        %812 = vmatprep.subr.mxu0 0.0
        %813 = vmatpush1.xpose.msra.mxu0 0.0
        %814 = vmatprep.subr.mxu0 0.0
        %815 = vmatpush1.xpose.msra.mxu0 0.0
        %816 = vmatprep.subr.mxu0 0.0
        %817 = vmatpush1.xpose.msra.mxu0 0.0
        %818 = vmatprep.subr.mxu0 0.0
        %819 = vmatpush1.xpose.msra.mxu0 0.0
        %820 = vmatprep.subr.mxu0 0.0
        %821 = vmatpush1.xpose.msra.mxu0 0.0
        %822 = vmatprep.subr.mxu0 0.0
        %823 = vmatpush1.xpose.msra.mxu0 0.0
        %824 = vmatprep.subr.mxu0 0.0
        %825 = vmatpush1.xpose.msra.mxu0 0.0
        %826 = vmatprep.subr.mxu0 0.0
        %827 = vmatpush1.xpose.msra.mxu0 0.0
        %828 = vmatprep.subr.mxu0 0.0
        %829 = vmatpush1.xpose.msra.mxu0 0.0
        %830 = vmatprep.subr.mxu0 0.0
        %831 = vmatpush1.xpose.msra.mxu0 0.0
        %832 = vmatprep.subr.mxu0 0.0
        %833 = vmatpush1.xpose.msra.mxu0 0.0
        %834 = vmatprep.subr.mxu0 0.0
        %835 = vmatpush1.xpose.msra.mxu0 0.0
        %836 = vmatprep.subr.mxu0 0.0
        %837 = vmatpush1.xpose.msra.mxu0 0.0
        %838 = vmatprep.subr.mxu0 0.0
        %839 = vmatpush1.xpose.msra.mxu0 0.0
        %840 = vmatprep.subr.mxu0 0.0
        %841 = vmatpush1.xpose.msra.mxu0 0.0
        %842 = vmatprep.subr.mxu0 0.0
        %843 = vmatpush1.xpose.msra.mxu0 0.0
        %844 = vmatprep.subr.mxu0 0.0
        %845 = vmatpush1.xpose.msra.mxu0 0.0
        %846 = vmatprep.subr.mxu0 0.0
        %847 = vmatpush1.xpose.msra.mxu0 0.0
        %848 = vmatprep.subr.mxu0 0.0
        %849 = vmatpush1.xpose.msra.mxu0 0.0
        %850 = vmatprep.subr.mxu0 0.0
        %851 = vmatpush1.xpose.msra.mxu0 0.0
        %852 = vmatprep.subr.mxu0 0.0
        %853 = vmatpush1.xpose.msra.mxu0 0.0
        %854 = vmatprep.subr.mxu0 0.0
        %855 = vmatpush1.xpose.msra.mxu0 0.0
        %856 = vmatprep.subr.mxu0 0.0
        %857 = vmatpush1.xpose.msra.mxu0 0.0
        %858 = vmatprep.subr.mxu0 0.0
        %859 = vmatpush1.xpose.msra.mxu0 0.0
        %860 = vmatprep.subr.mxu0 0.0
        %861 = vmatpush1.xpose.msra.mxu0 0.0
        %862 = vmatprep.subr.mxu0 0.0
        %863 = vmatpush1.xpose.msra.mxu0 0.0
        %864 = vmatprep.subr.mxu0 0.0
        %865 = vmatpush1.xpose.msra.mxu0 0.0
        %866 = vmatprep.subr.mxu0 0.0
        %867 = vmatpush1.xpose.msra.mxu0 0.0
        %868 = vmatprep.subr.mxu0 0.0
        %869 = vmatpush1.xpose.msra.mxu0 0.0
        %870 = vmatprep.subr.mxu0 0.0
        %871 = vmatpush1.xpose.msra.mxu0 0.0
        %872 = vmatprep.subr.mxu0 0.0
        %873 = vmatpush1.xpose.msra.mxu0 0.0
        %874 = vmatprep.mubr.f32.mxu0 0.0
        %875 = vmatmul.mubr.f32.gmra.mrb[0].mxu0 %v806
        %v876 = vpop.f32.mrb[0].mxu0
        %v877 = vadd.f32 0.0, %v876
        %v878 = vpop.f32.mrb[0].mxu0
        %879 = vdwg.mxu0
        %v880 = vmul.f32 %v877, 0.35355338
        %v881 = vadd.f32 %v880, %v520
        %v882 = vsel %vm636, %v881, -inf
        %883 = vmax.xlane.f32.xlu0 %v882
        %v884 = vpop.xlane.xlu0 %883
        %v885 = vsub.f32 %v881, %v884
        %v886 = vmul.f32 %v885, 1.442695
        %v887 = vpow.pop %v886
        %v888 = vsel %vm636, %v887, 0.0
        %889 = vadd.xlane.f32.xlu0 %v888
        %v890 = vpop.xlane.xlu0 %889
        %v891 = vrcp.pop %v890
        %v892 = vmul.f32 %v887, %v891
        %893 = vrot.lane.b32.xlu0 %v631, 88
        %v894 = vpop.permute.xlu0 %893
        %v897 = vsel %vm636, %v892, 0
        %899 = vmatprep.subr.mxu0 0.0
        %900 = vmatpush1.msra.mxu0 %v894
        %901 = vmatprep.subr.mxu0 0.0
        %902 = vmatpush1.msra.mxu0 0.0
        %903 = vmatprep.subr.mxu0 0.0
        %904 = vmatpush1.msra.mxu0 0.0
        %905 = vmatprep.subr.mxu0 0.0
        %906 = vmatpush1.msra.mxu0 0.0
        %907 = vmatprep.subr.mxu0 0.0
        %908 = vmatpush1.msra.mxu0 0.0
        %909 = vmatprep.subr.mxu0 0.0
        %910 = vmatpush1.msra.mxu0 0.0
        %911 = vmatprep.subr.mxu0 0.0
        %912 = vmatpush1.msra.mxu0 0.0
        %913 = vmatprep.subr.mxu0 0.0
        %914 = vmatpush1.msra.mxu0 0.0
        %915 = vmatprep.subr.mxu0 0.0
        %916 = vmatpush1.msra.mxu0 0.0
        %917 = vmatprep.subr.mxu0 0.0
        %918 = vmatpush1.msra.mxu0 0.0
        %919 = vmatprep.subr.mxu0 0.0
        %920 = vmatpush1.msra.mxu0 0.0
        %921 = vmatprep.subr.mxu0 0.0
        %922 = vmatpush1.msra.mxu0 0.0
        %923 = vmatprep.subr.mxu0 0.0
        %924 = vmatpush1.msra.mxu0 0.0
        %925 = vmatprep.subr.mxu0 0.0
        %926 = vmatpush1.msra.mxu0 0.0
        %927 = vmatprep.subr.mxu0 0.0
        %928 = vmatpush1.msra.mxu0 0.0
        %929 = vmatprep.subr.mxu0 0.0
        %930 = vmatpush1.msra.mxu0 0.0
        %931 = vmatprep.subr.mxu0 0.0
        %932 = vmatpush1.msra.mxu0 0.0
        %933 = vmatprep.subr.mxu0 0.0
        %934 = vmatpush1.msra.mxu0 0.0
        %935 = vmatprep.subr.mxu0 0.0
        %936 = vmatpush1.msra.mxu0 0.0
        %937 = vmatprep.subr.mxu0 0.0
        %938 = vmatpush1.msra.mxu0 0.0
        %939 = vmatprep.subr.mxu0 0.0
        %940 = vmatpush1.msra.mxu0 0.0
        %941 = vmatprep.subr.mxu0 0.0
        %942 = vmatpush1.msra.mxu0 0.0
        %943 = vmatprep.subr.mxu0 0.0
        %944 = vmatpush1.msra.mxu0 0.0
        %945 = vmatprep.subr.mxu0 0.0
        %946 = vmatpush1.msra.mxu0 0.0
        %947 = vmatprep.subr.mxu0 0.0
        %948 = vmatpush1.msra.mxu0 0.0
        %949 = vmatprep.subr.mxu0 0.0
        %950 = vmatpush1.msra.mxu0 0.0
        %951 = vmatprep.subr.mxu0 0.0
        %952 = vmatpush1.msra.mxu0 0.0
        %953 = vmatprep.subr.mxu0 0.0
        %954 = vmatpush1.msra.mxu0 0.0
        %955 = vmatprep.subr.mxu0 0.0
        %956 = vmatpush1.msra.mxu0 0.0
        %957 = vmatprep.subr.mxu0 0.0
        %958 = vmatpush1.msra.mxu0 0.0
        %959 = vmatprep.subr.mxu0 0.0
        %960 = vmatpush1.msra.mxu0 0.0
        %961 = vmatprep.subr.mxu0 0.0
        %962 = vmatpush1.msra.mxu0 0.0
        %963 = vmatprep.mubr.f32.mxu0 0.0
        %964 = vmatmul.mubr.f32.gmra.mrb[0].mxu0 %v897
        %v965 = vpop.f32.mrb[0].mxu0
        %v966 = vadd.f32 0.0, %v965
        %v967 = vpop.f32.mrb[0].mxu0
        %968 = vdwg.mxu0
        %969 = vrot.lane.b32.xlu0 %v574, 112
        %v970 = vpop.permute.xlu0 %969
        %971 = vrot.lane.b32.xlu0 %v631, 112
        %v972 = vpop.permute.xlu0 %971
        %v973 = vsel %vm636, %v970, 0
        %v975 = vsel %vm636, %v972, 0
        %977 = vmatprep.subr.mxu0 0.0
        %978 = vmatpush1.xpose.msra.mxu0 %v975
        %979 = vmatprep.subr.mxu0 0.0
        %980 = vmatpush1.xpose.msra.mxu0 0.0
        %981 = vmatprep.subr.mxu0 0.0
        %982 = vmatpush1.xpose.msra.mxu0 0.0
        %983 = vmatprep.subr.mxu0 0.0
        %984 = vmatpush1.xpose.msra.mxu0 0.0
        %985 = vmatprep.subr.mxu0 0.0
        %986 = vmatpush1.xpose.msra.mxu0 0.0
        %987 = vmatprep.subr.mxu0 0.0
        %988 = vmatpush1.xpose.msra.mxu0 0.0
        %989 = vmatprep.subr.mxu0 0.0
        %990 = vmatpush1.xpose.msra.mxu0 0.0
        %991 = vmatprep.subr.mxu0 0.0
        %992 = vmatpush1.xpose.msra.mxu0 0.0
        %993 = vmatprep.subr.mxu0 0.0
        %994 = vmatpush1.xpose.msra.mxu0 0.0
        %995 = vmatprep.subr.mxu0 0.0
        %996 = vmatpush1.xpose.msra.mxu0 0.0
        %997 = vmatprep.subr.mxu0 0.0
        %998 = vmatpush1.xpose.msra.mxu0 0.0
        %999 = vmatprep.subr.mxu0 0.0
        %1000 = vmatpush1.xpose.msra.mxu0 0.0
        %1001 = vmatprep.subr.mxu0 0.0
        %1002 = vmatpush1.xpose.msra.mxu0 0.0
        %1003 = vmatprep.subr.mxu0 0.0
        %1004 = vmatpush1.xpose.msra.mxu0 0.0
        %1005 = vmatprep.subr.mxu0 0.0
        %1006 = vmatpush1.xpose.msra.mxu0 0.0
        %1007 = vmatprep.subr.mxu0 0.0
        %1008 = vmatpush1.xpose.msra.mxu0 0.0
        %1009 = vmatprep.subr.mxu0 0.0
        %1010 = vmatpush1.xpose.msra.mxu0 0.0
        %1011 = vmatprep.subr.mxu0 0.0
        %1012 = vmatpush1.xpose.msra.mxu0 0.0
        %1013 = vmatprep.subr.mxu0 0.0
        %1014 = vmatpush1.xpose.msra.mxu0 0.0
        %1015 = vmatprep.subr.mxu0 0.0
        %1016 = vmatpush1.xpose.msra.mxu0 0.0
        %1017 = vmatprep.subr.mxu0 0.0
        %1018 = vmatpush1.xpose.msra.mxu0 0.0
        %1019 = vmatprep.subr.mxu0 0.0
        %1020 = vmatpush1.xpose.msra.mxu0 0.0
        %1021 = vmatprep.subr.mxu0 0.0
        %1022 = vmatpush1.xpose.msra.mxu0 0.0
        %1023 = vmatprep.subr.mxu0 0.0
        %1024 = vmatpush1.xpose.msra.mxu0 0.0
        %1025 = vmatprep.subr.mxu0 0.0
        %1026 = vmatpush1.xpose.msra.mxu0 0.0
        %1027 = vmatprep.subr.mxu0 0.0
        %1028 = vmatpush1.xpose.msra.mxu0 0.0
        %1029 = vmatprep.subr.mxu0 0.0
        %1030 = vmatpush1.xpose.msra.mxu0 0.0
        %1031 = vmatprep.subr.mxu0 0.0
        %1032 = vmatpush1.xpose.msra.mxu0 0.0
        %1033 = vmatprep.subr.mxu0 0.0
        %1034 = vmatpush1.xpose.msra.mxu0 0.0
        %1035 = vmatprep.subr.mxu0 0.0
        %1036 = vmatpush1.xpose.msra.mxu0 0.0
        %1037 = vmatprep.subr.mxu0 0.0
        %1038 = vmatpush1.xpose.msra.mxu0 0.0
        %1039 = vmatprep.subr.mxu0 0.0
        %1040 = vmatpush1.xpose.msra.mxu0 0.0
        %1041 = vmatprep.mubr.f32.mxu0 0.0
        %1042 = vmatmul.mubr.f32.gmra.mrb[0].mxu0 %v973
        %v1043 = vpop.f32.mrb[0].mxu0
        %v1044 = vadd.f32 0.0, %v1043
        %v1045 = vpop.f32.mrb[0].mxu0
        %1046 = vdwg.mxu0
        %v1047 = vmul.f32 %v1044, 0.35355338
        %v1048 = vadd.f32 %v1047, %v520
        %v1049 = vsel %vm636, %v1048, -inf
        %1050 = vmax.xlane.f32.xlu0 %v1049
        %v1051 = vpop.xlane.xlu0 %1050
        %v1052 = vsub.f32 %v1048, %v1051
        %v1053 = vmul.f32 %v1052, 1.442695
        %v1054 = vpow.pop %v1053
        %v1055 = vsel %vm636, %v1054, 0.0
        %1056 = vadd.xlane.f32.xlu0 %v1055
        %v1057 = vpop.xlane.xlu0 %1056
        %v1058 = vrcp.pop %v1057
        %v1059 = vmul.f32 %v1054, %v1058
        %1060 = vrot.lane.b32.xlu0 %v631, 80
        %v1061 = vpop.permute.xlu0 %1060
        %v1064 = vsel %vm636, %v1059, 0
        %1066 = vmatprep.subr.mxu0 0.0
        %1067 = vmatpush1.msra.mxu0 %v1061
        %1068 = vmatprep.subr.mxu0 0.0
        %1069 = vmatpush1.msra.mxu0 0.0
        %1070 = vmatprep.subr.mxu0 0.0
        %1071 = vmatpush1.msra.mxu0 0.0
        %1072 = vmatprep.subr.mxu0 0.0
        %1073 = vmatpush1.msra.mxu0 0.0
        %1074 = vmatprep.subr.mxu0 0.0
        %1075 = vmatpush1.msra.mxu0 0.0
        %1076 = vmatprep.subr.mxu0 0.0
        %1077 = vmatpush1.msra.mxu0 0.0
        %1078 = vmatprep.subr.mxu0 0.0
        %1079 = vmatpush1.msra.mxu0 0.0
        %1080 = vmatprep.subr.mxu0 0.0
        %1081 = vmatpush1.msra.mxu0 0.0
        %1082 = vmatprep.subr.mxu0 0.0
        %1083 = vmatpush1.msra.mxu0 0.0
        %1084 = vmatprep.subr.mxu0 0.0
        %1085 = vmatpush1.msra.mxu0 0.0
        %1086 = vmatprep.subr.mxu0 0.0
        %1087 = vmatpush1.msra.mxu0 0.0
        %1088 = vmatprep.subr.mxu0 0.0
        %1089 = vmatpush1.msra.mxu0 0.0
        %1090 = vmatprep.subr.mxu0 0.0
        %1091 = vmatpush1.msra.mxu0 0.0
        %1092 = vmatprep.subr.mxu0 0.0
        %1093 = vmatpush1.msra.mxu0 0.0
        %1094 = vmatprep.subr.mxu0 0.0
        %1095 = vmatpush1.msra.mxu0 0.0
        %1096 = vmatprep.subr.mxu0 0.0
        %1097 = vmatpush1.msra.mxu0 0.0
        %1098 = vmatprep.subr.mxu0 0.0
        %1099 = vmatpush1.msra.mxu0 0.0
        %1100 = vmatprep.subr.mxu0 0.0
        %1101 = vmatpush1.msra.mxu0 0.0
        %1102 = vmatprep.subr.mxu0 0.0
        %1103 = vmatpush1.msra.mxu0 0.0
        %1104 = vmatprep.subr.mxu0 0.0
        %1105 = vmatpush1.msra.mxu0 0.0
        %1106 = vmatprep.subr.mxu0 0.0
        %1107 = vmatpush1.msra.mxu0 0.0
        %1108 = vmatprep.subr.mxu0 0.0
        %1109 = vmatpush1.msra.mxu0 0.0
        %1110 = vmatprep.subr.mxu0 0.0
        %1111 = vmatpush1.msra.mxu0 0.0
        %1112 = vmatprep.subr.mxu0 0.0
        %1113 = vmatpush1.msra.mxu0 0.0
        %1114 = vmatprep.subr.mxu0 0.0
        %1115 = vmatpush1.msra.mxu0 0.0
        %1116 = vmatprep.subr.mxu0 0.0
        %1117 = vmatpush1.msra.mxu0 0.0
        %1118 = vmatprep.subr.mxu0 0.0
        %1119 = vmatpush1.msra.mxu0 0.0
        %1120 = vmatprep.subr.mxu0 0.0
        %1121 = vmatpush1.msra.mxu0 0.0
        %1122 = vmatprep.subr.mxu0 0.0
        %1123 = vmatpush1.msra.mxu0 0.0
        %1124 = vmatprep.subr.mxu0 0.0
        %1125 = vmatpush1.msra.mxu0 0.0
        %1126 = vmatprep.subr.mxu0 0.0
        %1127 = vmatpush1.msra.mxu0 0.0
        %1128 = vmatprep.subr.mxu0 0.0
        %1129 = vmatpush1.msra.mxu0 0.0
        %1130 = vmatprep.mubr.f32.mxu0 0.0
        %1131 = vmatmul.mubr.f32.gmra.mrb[0].mxu0 %v1064
        %v1132 = vpop.f32.mrb[0].mxu0
        %v1133 = vadd.f32 0.0, %v1132
        %v1134 = vpop.f32.mrb[0].mxu0
        %1135 = vdwg.mxu0
        %1136 = vrot.lane.b32.xlu0 %v574, 104
        %v1137 = vpop.permute.xlu0 %1136
        %1138 = vrot.lane.b32.xlu0 %v631, 104
        %v1139 = vpop.permute.xlu0 %1138
        %v1140 = vsel %vm636, %v1137, 0
        %v1142 = vsel %vm636, %v1139, 0
        %1144 = vmatprep.subr.mxu0 0.0
        %1145 = vmatpush1.xpose.msra.mxu0 %v1142
        %1146 = vmatprep.subr.mxu0 0.0
        %1147 = vmatpush1.xpose.msra.mxu0 0.0
        %1148 = vmatprep.subr.mxu0 0.0
        %1149 = vmatpush1.xpose.msra.mxu0 0.0
        %1150 = vmatprep.subr.mxu0 0.0
        %1151 = vmatpush1.xpose.msra.mxu0 0.0
        %1152 = vmatprep.subr.mxu0 0.0
        %1153 = vmatpush1.xpose.msra.mxu0 0.0
        %1154 = vmatprep.subr.mxu0 0.0
        %1155 = vmatpush1.xpose.msra.mxu0 0.0
        %1156 = vmatprep.subr.mxu0 0.0
        %1157 = vmatpush1.xpose.msra.mxu0 0.0
        %1158 = vmatprep.subr.mxu0 0.0
        %1159 = vmatpush1.xpose.msra.mxu0 0.0
        %1160 = vmatprep.subr.mxu0 0.0
        %1161 = vmatpush1.xpose.msra.mxu0 0.0
        %1162 = vmatprep.subr.mxu0 0.0
        %1163 = vmatpush1.xpose.msra.mxu0 0.0
        %1164 = vmatprep.subr.mxu0 0.0
        %1165 = vmatpush1.xpose.msra.mxu0 0.0
        %1166 = vmatprep.subr.mxu0 0.0
        %1167 = vmatpush1.xpose.msra.mxu0 0.0
        %1168 = vmatprep.subr.mxu0 0.0
        %1169 = vmatpush1.xpose.msra.mxu0 0.0
        %1170 = vmatprep.subr.mxu0 0.0
        %1171 = vmatpush1.xpose.msra.mxu0 0.0
        %1172 = vmatprep.subr.mxu0 0.0
        %1173 = vmatpush1.xpose.msra.mxu0 0.0
        %1174 = vmatprep.subr.mxu0 0.0
        %1175 = vmatpush1.xpose.msra.mxu0 0.0
        %1176 = vmatprep.subr.mxu0 0.0
        %1177 = vmatpush1.xpose.msra.mxu0 0.0
        %1178 = vmatprep.subr.mxu0 0.0
        %1179 = vmatpush1.xpose.msra.mxu0 0.0
        %1180 = vmatprep.subr.mxu0 0.0
        %1181 = vmatpush1.xpose.msra.mxu0 0.0
        %1182 = vmatprep.subr.mxu0 0.0
        %1183 = vmatpush1.xpose.msra.mxu0 0.0
        %1184 = vmatprep.subr.mxu0 0.0
        %1185 = vmatpush1.xpose.msra.mxu0 0.0
        %1186 = vmatprep.subr.mxu0 0.0
        %1187 = vmatpush1.xpose.msra.mxu0 0.0
        %1188 = vmatprep.subr.mxu0 0.0
        %1189 = vmatpush1.xpose.msra.mxu0 0.0
        %1190 = vmatprep.subr.mxu0 0.0
        %1191 = vmatpush1.xpose.msra.mxu0 0.0
        %1192 = vmatprep.subr.mxu0 0.0
        %1193 = vmatpush1.xpose.msra.mxu0 0.0
        %1194 = vmatprep.subr.mxu0 0.0
        %1195 = vmatpush1.xpose.msra.mxu0 0.0
        %1196 = vmatprep.subr.mxu0 0.0
        %1197 = vmatpush1.xpose.msra.mxu0 0.0
        %1198 = vmatprep.subr.mxu0 0.0
        %1199 = vmatpush1.xpose.msra.mxu0 0.0
        %1200 = vmatprep.subr.mxu0 0.0
        %1201 = vmatpush1.xpose.msra.mxu0 0.0
        %1202 = vmatprep.subr.mxu0 0.0
        %1203 = vmatpush1.xpose.msra.mxu0 0.0
        %1204 = vmatprep.subr.mxu0 0.0
        %1205 = vmatpush1.xpose.msra.mxu0 0.0
        %1206 = vmatprep.subr.mxu0 0.0
        %1207 = vmatpush1.xpose.msra.mxu0 0.0
        %1208 = vmatprep.mubr.f32.mxu0 0.0
        %1209 = vmatmul.mubr.f32.gmra.mrb[0].mxu0 %v1140
        %v1210 = vpop.f32.mrb[0].mxu0
        %v1211 = vadd.f32 0.0, %v1210
        %v1212 = vpop.f32.mrb[0].mxu0
        %1213 = vdwg.mxu0
        %v1214 = vmul.f32 %v1211, 0.35355338
        %v1215 = vadd.f32 %v1214, %v520
        %v1216 = vsel %vm636, %v1215, -inf
        %1217 = vmax.xlane.f32.xlu0 %v1216
        %v1218 = vpop.xlane.xlu0 %1217
        %v1219 = vsub.f32 %v1215, %v1218
        %v1220 = vmul.f32 %v1219, 1.442695
        %v1221 = vpow.pop %v1220
        %v1222 = vsel %vm636, %v1221, 0.0
        %1223 = vadd.xlane.f32.xlu0 %v1222
        %v1224 = vpop.xlane.xlu0 %1223
        %v1225 = vrcp.pop %v1224
        %v1226 = vmul.f32 %v1221, %v1225
        %1227 = vrot.lane.b32.xlu0 %v631, 72
        %v1228 = vpop.permute.xlu0 %1227
        %v1231 = vsel %vm636, %v1226, 0
        %1233 = vmatprep.subr.mxu0 0.0
        %1234 = vmatpush1.msra.mxu0 %v1228
        %1235 = vmatprep.subr.mxu0 0.0
        %1236 = vmatpush1.msra.mxu0 0.0
        %1237 = vmatprep.subr.mxu0 0.0
        %1238 = vmatpush1.msra.mxu0 0.0
        %1239 = vmatprep.subr.mxu0 0.0
        %1240 = vmatpush1.msra.mxu0 0.0
        %1241 = vmatprep.subr.mxu0 0.0
        %1242 = vmatpush1.msra.mxu0 0.0
        %1243 = vmatprep.subr.mxu0 0.0
        %1244 = vmatpush1.msra.mxu0 0.0
        %1245 = vmatprep.subr.mxu0 0.0
        %1246 = vmatpush1.msra.mxu0 0.0
        %1247 = vmatprep.subr.mxu0 0.0
        %1248 = vmatpush1.msra.mxu0 0.0
        %1249 = vmatprep.subr.mxu0 0.0
        %1250 = vmatpush1.msra.mxu0 0.0
        %1251 = vmatprep.subr.mxu0 0.0
        %1252 = vmatpush1.msra.mxu0 0.0
        %1253 = vmatprep.subr.mxu0 0.0
        %1254 = vmatpush1.msra.mxu0 0.0
        %1255 = vmatprep.subr.mxu0 0.0
        %1256 = vmatpush1.msra.mxu0 0.0
        %1257 = vmatprep.subr.mxu0 0.0
        %1258 = vmatpush1.msra.mxu0 0.0
        %1259 = vmatprep.subr.mxu0 0.0
        %1260 = vmatpush1.msra.mxu0 0.0
        %1261 = vmatprep.subr.mxu0 0.0
        %1262 = vmatpush1.msra.mxu0 0.0
        %1263 = vmatprep.subr.mxu0 0.0
        %1264 = vmatpush1.msra.mxu0 0.0
        %1265 = vmatprep.subr.mxu0 0.0
        %1266 = vmatpush1.msra.mxu0 0.0
        %1267 = vmatprep.subr.mxu0 0.0
        %1268 = vmatpush1.msra.mxu0 0.0
        %1269 = vmatprep.subr.mxu0 0.0
        %1270 = vmatpush1.msra.mxu0 0.0
        %1271 = vmatprep.subr.mxu0 0.0
        %1272 = vmatpush1.msra.mxu0 0.0
        %1273 = vmatprep.subr.mxu0 0.0
        %1274 = vmatpush1.msra.mxu0 0.0
        %1275 = vmatprep.subr.mxu0 0.0
        %1276 = vmatpush1.msra.mxu0 0.0
        %1277 = vmatprep.subr.mxu0 0.0
        %1278 = vmatpush1.msra.mxu0 0.0
        %1279 = vmatprep.subr.mxu0 0.0
        %1280 = vmatpush1.msra.mxu0 0.0
        %1281 = vmatprep.subr.mxu0 0.0
        %1282 = vmatpush1.msra.mxu0 0.0
        %1283 = vmatprep.subr.mxu0 0.0
        %1284 = vmatpush1.msra.mxu0 0.0
        %1285 = vmatprep.subr.mxu0 0.0
        %1286 = vmatpush1.msra.mxu0 0.0
        %1287 = vmatprep.subr.mxu0 0.0
        %1288 = vmatpush1.msra.mxu0 0.0
        %1289 = vmatprep.subr.mxu0 0.0
        %1290 = vmatpush1.msra.mxu0 0.0
        %1291 = vmatprep.subr.mxu0 0.0
        %1292 = vmatpush1.msra.mxu0 0.0
        %1293 = vmatprep.subr.mxu0 0.0
        %1294 = vmatpush1.msra.mxu0 0.0
        %1295 = vmatprep.subr.mxu0 0.0
        %1296 = vmatpush1.msra.mxu0 0.0
        %1297 = vmatprep.mubr.f32.mxu0 0.0
        %1298 = vmatmul.mubr.f32.gmra.mrb[0].mxu0 %v1231
        %v1299 = vpop.f32.mrb[0].mxu0
        %v1300 = vadd.f32 0.0, %v1299
        %v1301 = vpop.f32.mrb[0].mxu0
        %1302 = vdwg.mxu0
        %1304 = vrot.lane.b32.xlu0 %v966, 8
        %v1305 = vpop.permute.xlu0 %1304
        %1308 = vrot.lane.b32.xlu0 %v1133, 16
        %v1309 = vpop.permute.xlu0 %1308
        %1312 = vrot.lane.b32.xlu0 %v1300, 24
        %v1313 = vpop.permute.xlu0 %1312
        %v1315 = vsel %vm636, %v799, %v1305
        %vm1316 = vcmask 130048
        %v1317 = vsel %vm1316, %v1315, %v1309
        %vm1318 = vcmask 195584
        %v1319 = vsel %vm1318, %v1317, %v1313
        %v1320 = vpack.c.bf16 %v1319, %v1319
        %v1321 = vld [vmem:[#allocation11] sm:$0xff]
        %v1322 = vld [vmem:[#allocation11 + $0x8] sm:$0xff]
        %v1323 = vld [vmem:[#allocation11 + $0x10] sm:$0xff]
        %v1324 = vld [vmem:[#allocation11 + $0x18] sm:$0xff]
        %v1325 = vpack.c.bf16 %v1322, %v1321
        %v1326 = vpack.c.bf16 %v1324, %v1323
        %v1327 = vld [vmem:[%s8] sm:$0x1]
        %v1329 = vlaneseq
        %v1330 = vshrl.u32 %v1329, 7
        %v1331 = vsub.s32 0, %v1330
        %v1332 = vrot.slane %v1327, %v1331
        %v1335 = vsel %vm535, %v1320, 0
        %1337 = vmatprep.subr.bf16.mxu0 0
        %1338 = vmatpush1.bf16.msra.mxu0 %v1325
        %1339 = vmatprep.subr.bf16.mxu0 0
        %1340 = vmatpush1.bf16.msra.mxu0 %v1326
        %1341 = vmatprep.subr.bf16.mxu0 0
        %1342 = vmatpush1.bf16.msra.mxu0 0
        %1343 = vmatprep.subr.bf16.mxu0 0
        %1344 = vmatpush1.bf16.msra.mxu0 0
        %1345 = vmatprep.subr.bf16.mxu0 0
        %1346 = vmatpush1.bf16.msra.mxu0 0
        %1347 = vmatprep.subr.bf16.mxu0 0
        %1348 = vmatpush1.bf16.msra.mxu0 0
        %1349 = vmatprep.subr.bf16.mxu0 0
        %1350 = vmatpush1.bf16.msra.mxu0 0
        %1351 = vmatprep.subr.bf16.mxu0 0
        %1352 = vmatpush1.bf16.msra.mxu0 0
        %1353 = vmatprep.subr.bf16.mxu0 0
        %1354 = vmatpush1.bf16.msra.mxu0 0
        %1355 = vmatprep.subr.bf16.mxu0 0
        %1356 = vmatpush1.bf16.msra.mxu0 0
        %1357 = vmatprep.subr.bf16.mxu0 0
        %1358 = vmatpush1.bf16.msra.mxu0 0
        %1359 = vmatprep.subr.bf16.mxu0 0
        %1360 = vmatpush1.bf16.msra.mxu0 0
        %1361 = vmatprep.subr.bf16.mxu0 0
        %1362 = vmatpush1.bf16.msra.mxu0 0
        %1363 = vmatprep.subr.bf16.mxu0 0
        %1364 = vmatpush1.bf16.msra.mxu0 0
        %1365 = vmatprep.subr.bf16.mxu0 0
        %1366 = vmatpush1.bf16.msra.mxu0 0
        %1367 = vmatprep.subr.bf16.mxu0 0
        %1368 = vmatpush1.bf16.msra.mxu0 0
        %1369 = vmatprep.mubr.bf16.mxu0 0
        %1370 = vmatmul.mubr.bf16.gmra.mrb[0].mxu0 %v1335
        %v1371 = vpop.f32.mrb[0].mxu0
        %v1372 = vadd.f32 %v1332, %v1371
        %v1373 = vpop.f32.mrb[0].mxu0
        %v1374 = vpop.f32.mrb[0].mxu0
        %v1375 = vpop.f32.mrb[0].mxu0
        %1376 = vdwg.mxu0
        %v1377 = vadd.f32 %v518, %v1372
        %v1378 = vsel %vm535, %v1377, 0.0
        %1379 = vadd.xlane.f32.xlu0 %v1378
        %v1380 = vpop.xlane.xlu0 %1379
        %v1381 = vrcp.pop 32.0
        %v1382 = vmul.f32 %v1380, %v1381
        %v1383 = vsub.f32 %v1377, %v1382
        %v1384 = vmul.f32 %v1383, %v1383
        %v1385 = vsel %vm535, %v1384, 0.0
        %1386 = vadd.xlane.f32.xlu0 %v1385
        %v1387 = vpop.xlane.xlu0 %1386
        %v1388 = vmul.f32 %v1387, %v1381
        %v1389 = vadd.f32 %v1388, 1e-05
        %v1390 = vrsqrt.pop %v1389
        %v1391 = vmul.f32 %v1383, %v1390
        %v1392 = vld [vmem:[%s9] sm:$0x1]
        %v1394 = vlaneseq
        %v1395 = vshrl.u32 %v1394, 7
        %v1396 = vsub.s32 0, %v1395
        %v1397 = vrot.slane %v1392, %v1396
        %v1399 = vmul.f32 %v1391, %v1397
        %v1400 = vld [vmem:[%s10] sm:$0x1]
        %v1402 = vlaneseq
        %v1403 = vshrl.u32 %v1402, 7
        %v1404 = vsub.s32 0, %v1403
        %v1405 = vrot.slane %v1400, %v1404
        %v1407 = vadd.f32 %v1399, %v1405
        %1408 = vst.msk [vmem:[%s516] sm:$0xff] %vm535, %v1407
        %s1409 = sand.u32 %s287, 1
        %s1410 = scalar_lea.sflag [#allocation4], %s1409
        %s1411 = sand.u32 %s287, 1
        %s1412 = smul.addr %s1411, 8
        %s1413 = scalar_lea.vmem [#allocation13], %s1412
        // Predicated region
        $region89: #{tpu_custom_call.1} parent=63 // pred_check
          %p1414 = pneg %p297
        $region90: #{tpu_custom_call.1} parent=63 // pred_check_branch
          %1416 = sbr.rel (%p1414) target = $region92
        $region91: #{tpu_custom_call.1} parent=63 // pred_region
          %s1418 = ssub.s32 128, 128
          %1419 = vsyncadd %s1410, %s1418
          %s1420 = smul.addr %s33, 128
          %s1421 = scalar_lea.hbm %s11, %s1420
          %s1423 = sshll.u32 %s1413, 4
          %s1424 = int_to_ptr.vmem [resolvable:$true] %s1423
          %1426 = dma.vmem_to_hbm [thread:$0]  %s1424, 128, %s1421, %s1410
        $region92: #{tpu_custom_call.1} parent=63 // pred_fallthru
          _
      $region64: #{tpu_custom_call.1} parent=5 // pred_fallthru
        _
      %p1427 = scmp.le.s32.totalorder 2, %s28
      // Predicated region
      $region93: #{tpu_custom_call.1} parent=5 // pred_check
        %p1428 = pneg %p1427
      $region94: #{tpu_custom_call.1} parent=5 // pred_check_branch
        %1430 = sbr.rel (%p1428) target = $region96
      $region95: #{tpu_custom_call.1} parent=5 // pred_region
        %s1431 = ssub.s32 %s28, 2
        // Predicated region
        $region97: #{tpu_custom_call.1} parent=95 // pred_check
          %p1432 = pneg %p303
        $region98: #{tpu_custom_call.1} parent=95 // pred_check_branch
          %1434 = sbr.rel (%p1432) target = $region100
        $region99: #{tpu_custom_call.1} parent=95 // pred_region
          %s1435 = sand.u32 %s288, 1
          %s1436 = scalar_lea.sflag [#allocation4], %s1435
          %s1437 = sand.u32 %s288, 1
          %s1438 = smul.addr %s1437, 8
          %s1439 = scalar_lea.vmem [#allocation13], %s1438
          %1440 = dma.done %s1436, 128
        $region100: #{tpu_custom_call.1} parent=95 // pred_fallthru
          _
      $region96: #{tpu_custom_call.1} parent=5 // pred_fallthru
        _
    $region6: #{tpu_custom_call.1} parent=1 // loop_footer
      %s32 = sadd.s32 1, %s28
    $region7: #{tpu_custom_call.1} parent=1 // loop_footer_branch
      %27 = sbr.rel target = $region3
    $region8: #{tpu_custom_call.1} parent=1 // loop_exit
      _
    %1441 = vsyncpa [#allocation3], 1
    %s1442 = scalar_lea.sflag [#allocation3], 1
    %1443 = vsyncpa %s1442, 1
    %1444 = vsyncpa [#allocation6], 1
    %s1445 = scalar_lea.sflag [#allocation6], 1
    %1446 = vsyncpa %s1445, 1
    %1447 = vsyncpa [#allocation9], 1
    %1448 = vsyncpa [#allocation12], 1
    %1449 = vsyncpa [#allocation4], 1
    %s1450 = scalar_lea.sflag [#allocation4], 1
    %1451 = vsyncpa %s1450, 1

</llo_original>
